<compile_context>
chip_gen: v7x
topology: tpu7x:2x2x1
jax: 0.10.0
libtpu: 0.0.40
codegen_flags: <defaults>
</compile_context>

<pallas_src>
import functools
import math

import jax
import jax.numpy as jnp
from jax.experimental import pallas as pl
from jax.experimental.pallas import tpu as pltpu


def _inception_kernel(x_ref, w1_ref, w2_ref, w3_ref, o_ref,
                      pad2_ref, pad3_ref, col2_ref, col3_ref, *,
                      H, W, ch1x1, ch3x3, ch5x5, ch3x3_in, ch5x5_in):
    # x_ref : (1, Cin, H*W)                 bf16   (NCHW with spatial flattened)
    # w1_ref: (ch1x1+ch3x3_in+ch5x5_in, Cin) bf16  (all three 1x1 convs fused)
    # w2_ref: (ch3x3, 9*ch3x3_in)            bf16  (3x3 conv, im2col layout)
    # w3_ref: (ch5x5, 25*ch5x5_in)           bf16  (5x5 conv, im2col layout)
    # o_ref : (1, ch1x1+ch3x3+ch5x5, H*W)    f32   (NCHW-native, lane-dense)
    x = x_ref[0]                                                  # (Cin, HW)

    # ---- fused 1x1 convs for all three branches (single MXU push) ----
    y = jnp.dot(w1_ref[...], x, preferred_element_type=jnp.float32)
    y = jnp.maximum(y, 0.0)                                       # ReLU in f32

    # branch 1 -> output channels [0, ch1x1)   (full-lane 256-wide store)
    o_ref[0, 0:ch1x1, :] = y[0:ch1x1, :].astype(o_ref.dtype)

    b2a = y[ch1x1:ch1x1 + ch3x3_in, :]                            # (c2, HW) f32
    b3a = y[ch1x1 + ch3x3_in:ch1x1 + ch3x3_in + ch5x5_in, :]      # (c3, HW) f32

    def spatial_conv(act, pad_ref, col_ref, w_ref, K, cin):
        """KxK stride-1 'same' conv + ReLU on a (cin, H*W) activation."""
        p = (K - 1) // 2
        Wp = W + 2 * p                      # padded row stride
        L = (H - 1) * Wp + W                # flat output span (padded stride)

        # scatter activation rows into the zero-padded flat buffer
        pad_ref[...] = jnp.zeros_like(pad_ref)
        for h in range(H):
            off = (h + p) * Wp + p
            pad_ref[:, off:off + W] = act[:, h * W:(h + 1) * W]

        # im2col: tap (kh, kw) == contiguous slice offset by kh*Wp + kw
        P = pad_ref[...]                                          # (cin, Hp*Wp)
        for kh in range(K):
            for kw in range(K):
                k = kh * K + kw
                s = kh * Wp + kw
                col_ref[k * cin:(k + 1) * cin, :] = P[:, s:s + L].astype(col_ref.dtype)

        # one fat matmul: (cout, K*K*cin) @ (K*K*cin, L) -> (cout, L)
        acc = jnp.dot(w_ref[...], col_ref[...],
                      preferred_element_type=jnp.float32)
        return jnp.maximum(acc, 0.0), Wp                          # ReLU in f32

    # ---- branch 2: 3x3 conv (pad 1) -> output channels [ch1x1, ch1x1+ch3x3) ----
    acc2, Wp2 = spatial_conv(b2a, pad2_ref, col2_ref, w2_ref, 3, ch3x3_in)
    c0 = ch1x1
    for h in range(H):
        o_ref[0, c0:c0 + ch3x3, h * W:(h + 1) * W] = \
            acc2[:, h * Wp2:h * Wp2 + W].astype(o_ref.dtype)

    # ---- branch 3: 5x5 conv (pad 2) -> output channels [ch1x1+ch3x3, ...) ----
    acc3, Wp3 = spatial_conv(b3a, pad3_ref, col3_ref, w3_ref, 5, ch5x5_in)
    c0 = ch1x1 + ch3x3
    for h in range(H):
        o_ref[0, c0:c0 + ch5x5, h * W:(h + 1) * W] = \
            acc3[:, h * Wp3:h * Wp3 + W].astype(o_ref.dtype)


@jax.jit
def inception_block_light(params, x_nchw):
    """Forward pass of inceptionBlock_light. Input/output are NCHW like PyTorch."""
    N, Cin, H, W = x_nchw.shape
    ch1x1 = params["b1_w"].shape[-1]
    ch3x3_in = params["b2_w1"].shape[-1]
    ch3x3 = params["b2_w2"].shape[-1]
    ch5x5_in = params["b3_w1"].shape[-1]
    ch5x5 = params["b3_w2"].shape[-1]
    Ctot = ch1x1 + ch3x3 + ch5x5
    HW = H * W
    cdt = jnp.bfloat16                       # MXU operand dtype; accum stays f32

    # NCHW -> (N, Cin, H*W): a free, contiguous reshape (no transpose / pad).
    x_flat = x_nchw.reshape(N, Cin, HW).astype(cdt)

    # Fuse the three 1x1 conv weights along Cout; spatial weights go to
    # (Cout, K*K*Cin) matching the kernel's im2col tap ordering (kh, kw, ci).
    w1_all = jnp.concatenate(
        [params["b1_w"].reshape(Cin, ch1x1),
         params["b2_w1"].reshape(Cin, ch3x3_in),
         params["b3_w1"].reshape(Cin, ch5x5_in)], axis=1).T.astype(cdt)
    w2_mat = params["b2_w2"].reshape(3 * 3 * ch3x3_in, ch3x3).T.astype(cdt)
    w3_mat = params["b3_w2"].reshape(5 * 5 * ch5x5_in, ch5x5).T.astype(cdt)

    # Scratch geometry for the flat-padded conv trick.
    Hp3, Wp3 = H + 2, W + 2
    Hp5, Wp5 = H + 4, W + 4
    L3 = (H - 1) * Wp3 + W
    L5 = (H - 1) * Wp5 + W

    kernel = functools.partial(
        _inception_kernel, H=H, W=W, ch1x1=ch1x1, ch3x3=ch3x3, ch5x5=ch5x5,
        ch3x3_in=ch3x3_in, ch5x5_in=ch5x5_in)

    out_flat = pl.pallas_call(
        kernel,
        out_shape=jax.ShapeDtypeStruct((N, Ctot, HW), x_nchw.dtype),
        grid=(N,),
        in_specs=[
            pl.BlockSpec((1, Cin, HW), lambda n: (n, 0, 0)),
            pl.BlockSpec(w1_all.shape, lambda n: (0, 0)),   # weights: resident,
            pl.BlockSpec(w2_mat.shape, lambda n: (0, 0)),   # DMA'd once across
            pl.BlockSpec(w3_mat.shape, lambda n: (0, 0)),   # the batch grid
        ],
        out_specs=pl.BlockSpec((1, Ctot, HW), lambda n: (n, 0, 0)),
        scratch_shapes=[
            pltpu.VMEM((ch3x3_in, Hp3 * Wp3), jnp.float32),   # padded 3x3 input
            pltpu.VMEM((ch5x5_in, Hp5 * Wp5), jnp.float32),   # padded 5x5 input
            pltpu.VMEM((9 * ch3x3_in, L3), cdt),              # im2col (3x3)
            pltpu.VMEM((25 * ch5x5_in, L5), cdt),             # im2col (5x5)
        ],
        compiler_params=pltpu.CompilerParams(
            dimension_semantics=("parallel",)),               # both TCs on v7x
    )(x_flat, w1_all, w2_mat, w3_mat)

    # (N, Ctot, H*W) -> NCHW: contiguous reshape, no transpose or concat needed.
    return out_flat.reshape(N, Ctot, H, W)


def _conv_weight(key, K, cin, cout, dtype=jnp.float32):
    # Matches init_weights for nn.Conv2d: N(0, sqrt(2 / (kh*kw*out_channels)))
    std = math.sqrt(2.0 / (K * K * cout))
    return std * jax.random.normal(key, (K, K, cin, cout), dtype=dtype)


def init_inception_params(key, in_channels, ch1x1, ch3x3, ch5x5, ch3x3_in, ch5x5_in):
    k1, k2a, k2b, k3a, k3b = jax.random.split(key, 5)
    return {
        "b1_w": _conv_weight(k1, 1, in_channels, ch1x1),
        "b2_w1": _conv_weight(k2a, 1, in_channels, ch3x3_in),
        "b2_w2": _conv_weight(k2b, 3, ch3x3_in, ch3x3),
        "b3_w1": _conv_weight(k3a, 1, in_channels, ch5x5_in),
        "b3_w2": _conv_weight(k3b, 5, ch5x5_in, ch5x5),
    }


def _reference_forward(params, x_nchw):
    """Pure-JAX reference (lax.conv) mirroring the kernel's bf16 operand / f32
    accumulation numerics."""
    x = jnp.transpose(x_nchw, (0, 2, 3, 1))

    def conv(xx, w):
        y = jax.lax.conv_general_dilated(
            xx.astype(jnp.bfloat16), w.astype(jnp.bfloat16),
            window_strides=(1, 1), padding="SAME",
            dimension_numbers=("NHWC", "HWIO", "NHWC"),
            preferred_element_type=jnp.float32)
        return jnp.maximum(y, 0.0)

    b1 = conv(x, params["b1_w"])
    b2 = conv(conv(x, params["b2_w1"]), params["b2_w2"])
    b3 = conv(conv(x, params["b3_w1"]), params["b3_w2"])
    out = jnp.concatenate([b1, b2, b3], axis=-1)
    return jnp.transpose(out, (0, 3, 1, 2)).astype(x_nchw.dtype)


if __name__ == "__main__":
    key = jax.random.PRNGKey(0)
    kx, kp = jax.random.split(key)

    # Small shapes: batch=2, in_channels=4, spatial=16x16
    N, Cin, H, W = 2, 4, 16, 16
    ch1x1, ch3x3, ch5x5 = 8, 16, 8
    ch3x3_in, ch5x5_in = 8, 8

    x = jax.random.normal(kx, (N, Cin, H, W), dtype=jnp.float32)
    params = init_inception_params(kp, Cin, ch1x1, ch3x3, ch5x5, ch3x3_in, ch5x5_in)

    out = jax.block_until_ready(inception_block_light(params, x))
    assert out.shape == (N, ch1x1 + ch3x3 + ch5x5, H, W), out.shape

    ref = jax.block_until_ready(_reference_forward(params, x))
    err = float(jnp.max(jnp.abs(out - ref)))
    assert err < 1e-2, f"max abs err {err}"

    print("KERNEL_OK")
</pallas_src>

<mosaic_0001>
module attributes {stable_mosaic.version = 11 : i64} {
  func.func @_inception_kernel(%arg0: i32, %arg1: memref<1x4x256xbf16, #tpu.memory_space<vmem>>, %arg2: memref<24x4xbf16, #tpu.memory_space<vmem>>, %arg3: memref<16x72xbf16, #tpu.memory_space<vmem>>, %arg4: memref<8x200xbf16, #tpu.memory_space<vmem>>, %arg5: memref<1x32x256xf32, #tpu.memory_space<vmem>>, %arg6: memref<8x324xf32, #tpu.memory_space<vmem>>, %arg7: memref<8x400xf32, #tpu.memory_space<vmem>>, %arg8: memref<72x286xbf16, #tpu.memory_space<vmem>>, %arg9: memref<200x316xbf16, #tpu.memory_space<vmem>>) attributes {dimension_semantics = [#tpu.dimension_semantics<parallel>], iteration_bounds = array<i64: 2>, scalar_prefetch = 0 : i64, scratch_operands = 4 : i64, tpu.core_type = #tpu.core_type<tc>, window_params = [{transform_indices = @transform_0, window_bounds = array<i64: 1, 4, 256>}, {pipeline_mode = #tpu.pipeline_mode<synchronous>, transform_indices = @transform_1, window_bounds = array<i64: 24, 4>}, {pipeline_mode = #tpu.pipeline_mode<synchronous>, transform_indices = @transform_2, window_bounds = array<i64: 16, 72>}, {pipeline_mode = #tpu.pipeline_mode<synchronous>, transform_indices = @transform_3, window_bounds = array<i64: 8, 200>}, {transform_indices = @transform_4, window_bounds = array<i64: 1, 32, 256>}]} {
    %c0 = arith.constant 0 : index
    %c0_0 = arith.constant 0 : index
    %c0_1 = arith.constant 0 : index
    %0 = vector.load %arg1[%c0, %c0_0, %c0_1] : memref<1x4x256xbf16, #tpu.memory_space<vmem>>, vector<1x4x256xbf16>
    %1 = vector.shape_cast %0 : vector<1x4x256xbf16> to vector<4x256xbf16>
    %c0_2 = arith.constant 0 : index
    %c0_3 = arith.constant 0 : index
    %2 = vector.load %arg2[%c0_2, %c0_3] : memref<24x4xbf16, #tpu.memory_space<vmem>>, vector<24x4xbf16>
    %cst = arith.constant dense<0.000000e+00> : vector<24x256xf32>
    %3 = tpu.matmul %2, %1, %cst {dimension_numbers = #tpu.dot_dimension_numbers<[1], [0], [0], [1], [0, 0, 1, 1], [], []>} : vector<24x4xbf16>, vector<4x256xbf16>, vector<24x256xf32> -> vector<24x256xf32>
    %cst_4 = arith.constant 0.000000e+00 : f32
    %4 = vector.broadcast %cst_4 : f32 to vector<24x256xf32>
    %5 = arith.maximumf %3, %4 : vector<24x256xf32>
    %6 = vector.extract_strided_slice %5 {offsets = [0, 0], sizes = [8, 256], strides = [1, 1]} : vector<24x256xf32> to vector<8x256xf32>
    %c0_5 = arith.constant 0 : index
    %c0_6 = arith.constant 0 : index
    %c0_7 = arith.constant 0 : index
    %7 = vector.load %arg5[%c0_5, %c0_6, %c0_7] : memref<1x32x256xf32, #tpu.memory_space<vmem>>, vector<1x8x256xf32>
    %8 = vector.shape_cast %7 : vector<1x8x256xf32> to vector<8x256xf32>
    %9 = vector.shape_cast %6 : vector<8x256xf32> to vector<1x8x256xf32>
    tpu.vector_store %arg5[%c0_5, %c0_6, %c0_7], %9 {strides = array<i32>} : memref<1x32x256xf32, #tpu.memory_space<vmem>>, vector<1x8x256xf32>,
    %10 = vector.extract_strided_slice %5 {offsets = [8, 0], sizes = [8, 256], strides = [1, 1]} : vector<24x256xf32> to vector<8x256xf32>
    %11 = vector.extract_strided_slice %5 {offsets = [16, 0], sizes = [8, 256], strides = [1, 1]} : vector<24x256xf32> to vector<8x256xf32>
    %cst_8 = arith.constant 0.000000e+00 : f32
    %12 = vector.broadcast %cst_8 : f32 to vector<8x324xf32>
    %c0_9 = arith.constant 0 : index
    %c0_10 = arith.constant 0 : index
    %13 = vector.load %arg6[%c0_9, %c0_10] : memref<8x324xf32, #tpu.memory_space<vmem>>, vector<8x324xf32>
    tpu.vector_store %arg6[%c0_9, %c0_10], %12 {strides = array<i32>} : memref<8x324xf32, #tpu.memory_space<vmem>>, vector<8x324xf32>,
    %14 = vector.extract_strided_slice %10 {offsets = [0, 0], sizes = [8, 16], strides = [1, 1]} : vector<8x256xf32> to vector<8x16xf32>
    %c0_11 = arith.constant 0 : index
    %c19 = arith.constant 19 : index
    %15 = vector.load %arg6[%c0_11, %c19] : memref<8x324xf32, #tpu.memory_space<vmem>>, vector<8x16xf32>
    tpu.vector_store %arg6[%c0_11, %c19], %14 {strides = array<i32>} : memref<8x324xf32, #tpu.memory_space<vmem>>, vector<8x16xf32>,
    %16 = vector.extract_strided_slice %10 {offsets = [0, 16], sizes = [8, 16], strides = [1, 1]} : vector<8x256xf32> to vector<8x16xf32>
    %c0_12 = arith.constant 0 : index
    %c37 = arith.constant 37 : index
    %17 = vector.load %arg6[%c0_12, %c37] : memref<8x324xf32, #tpu.memory_space<vmem>>, vector<8x16xf32>
    tpu.vector_store %arg6[%c0_12, %c37], %16 {strides = array<i32>} : memref<8x324xf32, #tpu.memory_space<vmem>>, vector<8x16xf32>,
    %18 = vector.extract_strided_slice %10 {offsets = [0, 32], sizes = [8, 16], strides = [1, 1]} : vector<8x256xf32> to vector<8x16xf32>
    %c0_13 = arith.constant 0 : index
    %c55 = arith.constant 55 : index
    %19 = vector.load %arg6[%c0_13, %c55] : memref<8x324xf32, #tpu.memory_space<vmem>>, vector<8x16xf32>
    tpu.vector_store %arg6[%c0_13, %c55], %18 {strides = array<i32>} : memref<8x324xf32, #tpu.memory_space<vmem>>, vector<8x16xf32>,
    %20 = vector.extract_strided_slice %10 {offsets = [0, 48], sizes = [8, 16], strides = [1, 1]} : vector<8x256xf32> to vector<8x16xf32>
    %c0_14 = arith.constant 0 : index
    %c73 = arith.constant 73 : index
    %21 = vector.load %arg6[%c0_14, %c73] : memref<8x324xf32, #tpu.memory_space<vmem>>, vector<8x16xf32>
    tpu.vector_store %arg6[%c0_14, %c73], %20 {strides = array<i32>} : memref<8x324xf32, #tpu.memory_space<vmem>>, vector<8x16xf32>,
    %22 = vector.extract_strided_slice %10 {offsets = [0, 64], sizes = [8, 16], strides = [1, 1]} : vector<8x256xf32> to vector<8x16xf32>
    %c0_15 = arith.constant 0 : index
    %c91 = arith.constant 91 : index
    %23 = vector.load %arg6[%c0_15, %c91] : memref<8x324xf32, #tpu.memory_space<vmem>>, vector<8x16xf32>
    tpu.vector_store %arg6[%c0_15, %c91], %22 {strides = array<i32>} : memref<8x324xf32, #tpu.memory_space<vmem>>, vector<8x16xf32>,
    %24 = vector.extract_strided_slice %10 {offsets = [0, 80], sizes = [8, 16], strides = [1, 1]} : vector<8x256xf32> to vector<8x16xf32>
    %c0_16 = arith.constant 0 : index
    %c109 = arith.constant 109 : index
    %25 = vector.load %arg6[%c0_16, %c109] : memref<8x324xf32, #tpu.memory_space<vmem>>, vector<8x16xf32>
    tpu.vector_store %arg6[%c0_16, %c109], %24 {strides = array<i32>} : memref<8x324xf32, #tpu.memory_space<vmem>>, vector<8x16xf32>,
    %26 = vector.extract_strided_slice %10 {offsets = [0, 96], sizes = [8, 16], strides = [1, 1]} : vector<8x256xf32> to vector<8x16xf32>
    %c0_17 = arith.constant 0 : index
    %c127 = arith.constant 127 : index
    %27 = vector.load %arg6[%c0_17, %c127] : memref<8x324xf32, #tpu.memory_space<vmem>>, vector<8x16xf32>
    tpu.vector_store %arg6[%c0_17, %c127], %26 {strides = array<i32>} : memref<8x324xf32, #tpu.memory_space<vmem>>, vector<8x16xf32>,
    %28 = vector.extract_strided_slice %10 {offsets = [0, 112], sizes = [8, 16], strides = [1, 1]} : vector<8x256xf32> to vector<8x16xf32>
    %c0_18 = arith.constant 0 : index
    %c145 = arith.constant 145 : index
    %29 = vector.load %arg6[%c0_18, %c145] : memref<8x324xf32, #tpu.memory_space<vmem>>, vector<8x16xf32>
    tpu.vector_store %arg6[%c0_18, %c145], %28 {strides = array<i32>} : memref<8x324xf32, #tpu.memory_space<vmem>>, vector<8x16xf32>,
    %30 = vector.extract_strided_slice %10 {offsets = [0, 128], sizes = [8, 16], strides = [1, 1]} : vector<8x256xf32> to vector<8x16xf32>
    %c0_19 = arith.constant 0 : index
    %c163 = arith.constant 163 : index
    %31 = vector.load %arg6[%c0_19, %c163] : memref<8x324xf32, #tpu.memory_space<vmem>>, vector<8x16xf32>
    tpu.vector_store %arg6[%c0_19, %c163], %30 {strides = array<i32>} : memref<8x324xf32, #tpu.memory_space<vmem>>, vector<8x16xf32>,
    %32 = vector.extract_strided_slice %10 {offsets = [0, 144], sizes = [8, 16], strides = [1, 1]} : vector<8x256xf32> to vector<8x16xf32>
    %c0_20 = arith.constant 0 : index
    %c181 = arith.constant 181 : index
    %33 = vector.load %arg6[%c0_20, %c181] : memref<8x324xf32, #tpu.memory_space<vmem>>, vector<8x16xf32>
    tpu.vector_store %arg6[%c0_20, %c181], %32 {strides = array<i32>} : memref<8x324xf32, #tpu.memory_space<vmem>>, vector<8x16xf32>,
    %34 = vector.extract_strided_slice %10 {offsets = [0, 160], sizes = [8, 16], strides = [1, 1]} : vector<8x256xf32> to vector<8x16xf32>
    %c0_21 = arith.constant 0 : index
    %c199 = arith.constant 199 : index
    %35 = vector.load %arg6[%c0_21, %c199] : memref<8x324xf32, #tpu.memory_space<vmem>>, vector<8x16xf32>
    tpu.vector_store %arg6[%c0_21, %c199], %34 {strides = array<i32>} : memref<8x324xf32, #tpu.memory_space<vmem>>, vector<8x16xf32>,
    %36 = vector.extract_strided_slice %10 {offsets = [0, 176], sizes = [8, 16], strides = [1, 1]} : vector<8x256xf32> to vector<8x16xf32>
    %c0_22 = arith.constant 0 : index
    %c217 = arith.constant 217 : index
    %37 = vector.load %arg6[%c0_22, %c217] : memref<8x324xf32, #tpu.memory_space<vmem>>, vector<8x16xf32>
    tpu.vector_store %arg6[%c0_22, %c217], %36 {strides = array<i32>} : memref<8x324xf32, #tpu.memory_space<vmem>>, vector<8x16xf32>,
    %38 = vector.extract_strided_slice %10 {offsets = [0, 192], sizes = [8, 16], strides = [1, 1]} : vector<8x256xf32> to vector<8x16xf32>
    %c0_23 = arith.constant 0 : index
    %c235 = arith.constant 235 : index
    %39 = vector.load %arg6[%c0_23, %c235] : memref<8x324xf32, #tpu.memory_space<vmem>>, vector<8x16xf32>
    tpu.vector_store %arg6[%c0_23, %c235], %38 {strides = array<i32>} : memref<8x324xf32, #tpu.memory_space<vmem>>, vector<8x16xf32>,
    %40 = vector.extract_strided_slice %10 {offsets = [0, 208], sizes = [8, 16], strides = [1, 1]} : vector<8x256xf32> to vector<8x16xf32>
    %c0_24 = arith.constant 0 : index
    %c253 = arith.constant 253 : index
    %41 = vector.load %arg6[%c0_24, %c253] : memref<8x324xf32, #tpu.memory_space<vmem>>, vector<8x16xf32>
    tpu.vector_store %arg6[%c0_24, %c253], %40 {strides = array<i32>} : memref<8x324xf32, #tpu.memory_space<vmem>>, vector<8x16xf32>,
    %42 = vector.extract_strided_slice %10 {offsets = [0, 224], sizes = [8, 16], strides = [1, 1]} : vector<8x256xf32> to vector<8x16xf32>
    %c0_25 = arith.constant 0 : index
    %c271 = arith.constant 271 : index
    %43 = vector.load %arg6[%c0_25, %c271] : memref<8x324xf32, #tpu.memory_space<vmem>>, vector<8x16xf32>
    tpu.vector_store %arg6[%c0_25, %c271], %42 {strides = array<i32>} : memref<8x324xf32, #tpu.memory_space<vmem>>, vector<8x16xf32>,
    %44 = vector.extract_strided_slice %10 {offsets = [0, 240], sizes = [8, 16], strides = [1, 1]} : vector<8x256xf32> to vector<8x16xf32>
    %c0_26 = arith.constant 0 : index
    %c289 = arith.constant 289 : index
    %45 = vector.load %arg6[%c0_26, %c289] : memref<8x324xf32, #tpu.memory_space<vmem>>, vector<8x16xf32>
    tpu.vector_store %arg6[%c0_26, %c289], %44 {strides = array<i32>} : memref<8x324xf32, #tpu.memory_space<vmem>>, vector<8x16xf32>,
    %c0_27 = arith.constant 0 : index
    %c0_28 = arith.constant 0 : index
    %46 = vector.load %arg6[%c0_27, %c0_28] : memref<8x324xf32, #tpu.memory_space<vmem>>, vector<8x324xf32>
    %47 = vector.extract_strided_slice %46 {offsets = [0, 0], sizes = [8, 286], strides = [1, 1]} : vector<8x324xf32> to vector<8x286xf32>
    %48 = arith.truncf %47 : vector<8x286xf32> to vector<8x286xbf16>
    %c0_29 = arith.constant 0 : index
    %c0_30 = arith.constant 0 : index
    %49 = vector.load %arg8[%c0_29, %c0_30] : memref<72x286xbf16, #tpu.memory_space<vmem>>, vector<8x286xbf16>
    tpu.vector_store %arg8[%c0_29, %c0_30], %48 {strides = array<i32>} : memref<72x286xbf16, #tpu.memory_space<vmem>>, vector<8x286xbf16>,
    %50 = vector.extract_strided_slice %46 {offsets = [0, 1], sizes = [8, 286], strides = [1, 1]} : vector<8x324xf32> to vector<8x286xf32>
    %51 = arith.truncf %50 : vector<8x286xf32> to vector<8x286xbf16>
    %c8 = arith.constant 8 : index
    %c0_31 = arith.constant 0 : index
    %52 = vector.load %arg8[%c8, %c0_31] : memref<72x286xbf16, #tpu.memory_space<vmem>>, vector<8x286xbf16>
    tpu.vector_store %arg8[%c8, %c0_31], %51 {strides = array<i32>} : memref<72x286xbf16, #tpu.memory_space<vmem>>, vector<8x286xbf16>,
    %53 = vector.extract_strided_slice %46 {offsets = [0, 2], sizes = [8, 286], strides = [1, 1]} : vector<8x324xf32> to vector<8x286xf32>
    %54 = arith.truncf %53 : vector<8x286xf32> to vector<8x286xbf16>
    %c16 = arith.constant 16 : index
    %c0_32 = arith.constant 0 : index
    %55 = vector.load %arg8[%c16, %c0_32] : memref<72x286xbf16, #tpu.memory_space<vmem>>, vector<8x286xbf16>
    tpu.vector_store %arg8[%c16, %c0_32], %54 {strides = array<i32>} : memref<72x286xbf16, #tpu.memory_space<vmem>>, vector<8x286xbf16>,
    %56 = vector.extract_strided_slice %46 {offsets = [0, 18], sizes = [8, 286], strides = [1, 1]} : vector<8x324xf32> to vector<8x286xf32>
    %57 = arith.truncf %56 : vector<8x286xf32> to vector<8x286xbf16>
    %c24 = arith.constant 24 : index
    %c0_33 = arith.constant 0 : index
    %58 = vector.load %arg8[%c24, %c0_33] : memref<72x286xbf16, #tpu.memory_space<vmem>>, vector<8x286xbf16>
    tpu.vector_store %arg8[%c24, %c0_33], %57 {strides = array<i32>} : memref<72x286xbf16, #tpu.memory_space<vmem>>, vector<8x286xbf16>,
    %59 = vector.extract_strided_slice %46 {offsets = [0, 19], sizes = [8, 286], strides = [1, 1]} : vector<8x324xf32> to vector<8x286xf32>
    %60 = arith.truncf %59 : vector<8x286xf32> to vector<8x286xbf16>
    %c32 = arith.constant 32 : index
    %c0_34 = arith.constant 0 : index
    %61 = vector.load %arg8[%c32, %c0_34] : memref<72x286xbf16, #tpu.memory_space<vmem>>, vector<8x286xbf16>
    tpu.vector_store %arg8[%c32, %c0_34], %60 {strides = array<i32>} : memref<72x286xbf16, #tpu.memory_space<vmem>>, vector<8x286xbf16>,
    %62 = vector.extract_strided_slice %46 {offsets = [0, 20], sizes = [8, 286], strides = [1, 1]} : vector<8x324xf32> to vector<8x286xf32>
    %63 = arith.truncf %62 : vector<8x286xf32> to vector<8x286xbf16>
    %c40 = arith.constant 40 : index
    %c0_35 = arith.constant 0 : index
    %64 = vector.load %arg8[%c40, %c0_35] : memref<72x286xbf16, #tpu.memory_space<vmem>>, vector<8x286xbf16>
    tpu.vector_store %arg8[%c40, %c0_35], %63 {strides = array<i32>} : memref<72x286xbf16, #tpu.memory_space<vmem>>, vector<8x286xbf16>,
    %65 = vector.extract_strided_slice %46 {offsets = [0, 36], sizes = [8, 286], strides = [1, 1]} : vector<8x324xf32> to vector<8x286xf32>
    %66 = arith.truncf %65 : vector<8x286xf32> to vector<8x286xbf16>
    %c48 = arith.constant 48 : index
    %c0_36 = arith.constant 0 : index
    %67 = vector.load %arg8[%c48, %c0_36] : memref<72x286xbf16, #tpu.memory_space<vmem>>, vector<8x286xbf16>
    tpu.vector_store %arg8[%c48, %c0_36], %66 {strides = array<i32>} : memref<72x286xbf16, #tpu.memory_space<vmem>>, vector<8x286xbf16>,
    %68 = vector.extract_strided_slice %46 {offsets = [0, 37], sizes = [8, 286], strides = [1, 1]} : vector<8x324xf32> to vector<8x286xf32>
    %69 = arith.truncf %68 : vector<8x286xf32> to vector<8x286xbf16>
    %c56 = arith.constant 56 : index
    %c0_37 = arith.constant 0 : index
    %70 = vector.load %arg8[%c56, %c0_37] : memref<72x286xbf16, #tpu.memory_space<vmem>>, vector<8x286xbf16>
    tpu.vector_store %arg8[%c56, %c0_37], %69 {strides = array<i32>} : memref<72x286xbf16, #tpu.memory_space<vmem>>, vector<8x286xbf16>,
    %71 = vector.extract_strided_slice %46 {offsets = [0, 38], sizes = [8, 286], strides = [1, 1]} : vector<8x324xf32> to vector<8x286xf32>
    %72 = arith.truncf %71 : vector<8x286xf32> to vector<8x286xbf16>
    %c64 = arith.constant 64 : index
    %c0_38 = arith.constant 0 : index
    %73 = vector.load %arg8[%c64, %c0_38] : memref<72x286xbf16, #tpu.memory_space<vmem>>, vector<8x286xbf16>
    tpu.vector_store %arg8[%c64, %c0_38], %72 {strides = array<i32>} : memref<72x286xbf16, #tpu.memory_space<vmem>>, vector<8x286xbf16>,
    %c0_39 = arith.constant 0 : index
    %c0_40 = arith.constant 0 : index
    %74 = vector.load %arg3[%c0_39, %c0_40] : memref<16x72xbf16, #tpu.memory_space<vmem>>, vector<16x72xbf16>
    %c0_41 = arith.constant 0 : index
    %c0_42 = arith.constant 0 : index
    %75 = vector.load %arg8[%c0_41, %c0_42] : memref<72x286xbf16, #tpu.memory_space<vmem>>, vector<72x286xbf16>
    %cst_43 = arith.constant dense<0.000000e+00> : vector<16x286xf32>
    %76 = tpu.matmul %74, %75, %cst_43 {dimension_numbers = #tpu.dot_dimension_numbers<[1], [0], [0], [1], [0, 0, 1, 1], [], []>} : vector<16x72xbf16>, vector<72x286xbf16>, vector<16x286xf32> -> vector<16x286xf32>
    %cst_44 = arith.constant 0.000000e+00 : f32
    %77 = vector.broadcast %cst_44 : f32 to vector<16x286xf32>
    %78 = arith.maximumf %76, %77 : vector<16x286xf32>
    %79 = vector.extract_strided_slice %78 {offsets = [0, 0], sizes = [16, 16], strides = [1, 1]} : vector<16x286xf32> to vector<16x16xf32>
    %c0_45 = arith.constant 0 : index
    %c8_46 = arith.constant 8 : index
    %c0_47 = arith.constant 0 : index
    %80 = vector.load %arg5[%c0_45, %c8_46, %c0_47] : memref<1x32x256xf32, #tpu.memory_space<vmem>>, vector<1x16x16xf32>
    %81 = vector.shape_cast %80 : vector<1x16x16xf32> to vector<16x16xf32>
    %82 = vector.shape_cast %79 : vector<16x16xf32> to vector<1x16x16xf32>
    tpu.vector_store %arg5[%c0_45, %c8_46, %c0_47], %82 {strides = array<i32>} : memref<1x32x256xf32, #tpu.memory_space<vmem>>, vector<1x16x16xf32>,
    %83 = vector.extract_strided_slice %78 {offsets = [0, 18], sizes = [16, 16], strides = [1, 1]} : vector<16x286xf32> to vector<16x16xf32>
    %c0_48 = arith.constant 0 : index
    %c8_49 = arith.constant 8 : index
    %c16_50 = arith.constant 16 : index
    %84 = vector.load %arg5[%c0_48, %c8_49, %c16_50] : memref<1x32x256xf32, #tpu.memory_space<vmem>>, vector<1x16x16xf32>
    %85 = vector.shape_cast %84 : vector<1x16x16xf32> to vector<16x16xf32>
    %86 = vector.shape_cast %83 : vector<16x16xf32> to vector<1x16x16xf32>
    tpu.vector_store %arg5[%c0_48, %c8_49, %c16_50], %86 {strides = array<i32>} : memref<1x32x256xf32, #tpu.memory_space<vmem>>, vector<1x16x16xf32>,
    %87 = vector.extract_strided_slice %78 {offsets = [0, 36], sizes = [16, 16], strides = [1, 1]} : vector<16x286xf32> to vector<16x16xf32>
    %c0_51 = arith.constant 0 : index
    %c8_52 = arith.constant 8 : index
    %c32_53 = arith.constant 32 : index
    %88 = vector.load %arg5[%c0_51, %c8_52, %c32_53] : memref<1x32x256xf32, #tpu.memory_space<vmem>>, vector<1x16x16xf32>
    %89 = vector.shape_cast %88 : vector<1x16x16xf32> to vector<16x16xf32>
    %90 = vector.shape_cast %87 : vector<16x16xf32> to vector<1x16x16xf32>
    tpu.vector_store %arg5[%c0_51, %c8_52, %c32_53], %90 {strides = array<i32>} : memref<1x32x256xf32, #tpu.memory_space<vmem>>, vector<1x16x16xf32>,
    %91 = vector.extract_strided_slice %78 {offsets = [0, 54], sizes = [16, 16], strides = [1, 1]} : vector<16x286xf32> to vector<16x16xf32>
    %c0_54 = arith.constant 0 : index
    %c8_55 = arith.constant 8 : index
    %c48_56 = arith.constant 48 : index
    %92 = vector.load %arg5[%c0_54, %c8_55, %c48_56] : memref<1x32x256xf32, #tpu.memory_space<vmem>>, vector<1x16x16xf32>
    %93 = vector.shape_cast %92 : vector<1x16x16xf32> to vector<16x16xf32>
    %94 = vector.shape_cast %91 : vector<16x16xf32> to vector<1x16x16xf32>
    tpu.vector_store %arg5[%c0_54, %c8_55, %c48_56], %94 {strides = array<i32>} : memref<1x32x256xf32, #tpu.memory_space<vmem>>, vector<1x16x16xf32>,
    %95 = vector.extract_strided_slice %78 {offsets = [0, 72], sizes = [16, 16], strides = [1, 1]} : vector<16x286xf32> to vector<16x16xf32>
    %c0_57 = arith.constant 0 : index
    %c8_58 = arith.constant 8 : index
    %c64_59 = arith.constant 64 : index
    %96 = vector.load %arg5[%c0_57, %c8_58, %c64_59] : memref<1x32x256xf32, #tpu.memory_space<vmem>>, vector<1x16x16xf32>
    %97 = vector.shape_cast %96 : vector<1x16x16xf32> to vector<16x16xf32>
    %98 = vector.shape_cast %95 : vector<16x16xf32> to vector<1x16x16xf32>
    tpu.vector_store %arg5[%c0_57, %c8_58, %c64_59], %98 {strides = array<i32>} : memref<1x32x256xf32, #tpu.memory_space<vmem>>, vector<1x16x16xf32>,
    %99 = vector.extract_strided_slice %78 {offsets = [0, 90], sizes = [16, 16], strides = [1, 1]} : vector<16x286xf32> to vector<16x16xf32>
    %c0_60 = arith.constant 0 : index
    %c8_61 = arith.constant 8 : index
    %c80 = arith.constant 80 : index
    %100 = vector.load %arg5[%c0_60, %c8_61, %c80] : memref<1x32x256xf32, #tpu.memory_space<vmem>>, vector<1x16x16xf32>
    %101 = vector.shape_cast %100 : vector<1x16x16xf32> to vector<16x16xf32>
    %102 = vector.shape_cast %99 : vector<16x16xf32> to vector<1x16x16xf32>
    tpu.vector_store %arg5[%c0_60, %c8_61, %c80], %102 {strides = array<i32>} : memref<1x32x256xf32, #tpu.memory_space<vmem>>, vector<1x16x16xf32>,
    %103 = vector.extract_strided_slice %78 {offsets = [0, 108], sizes = [16, 16], strides = [1, 1]} : vector<16x286xf32> to vector<16x16xf32>
    %c0_62 = arith.constant 0 : index
    %c8_63 = arith.constant 8 : index
    %c96 = arith.constant 96 : index
    %104 = vector.load %arg5[%c0_62, %c8_63, %c96] : memref<1x32x256xf32, #tpu.memory_space<vmem>>, vector<1x16x16xf32>
    %105 = vector.shape_cast %104 : vector<1x16x16xf32> to vector<16x16xf32>
    %106 = vector.shape_cast %103 : vector<16x16xf32> to vector<1x16x16xf32>
    tpu.vector_store %arg5[%c0_62, %c8_63, %c96], %106 {strides = array<i32>} : memref<1x32x256xf32, #tpu.memory_space<vmem>>, vector<1x16x16xf32>,
    %107 = vector.extract_strided_slice %78 {offsets = [0, 126], sizes = [16, 16], strides = [1, 1]} : vector<16x286xf32> to vector<16x16xf32>
    %c0_64 = arith.constant 0 : index
    %c8_65 = arith.constant 8 : index
    %c112 = arith.constant 112 : index
    %108 = vector.load %arg5[%c0_64, %c8_65, %c112] : memref<1x32x256xf32, #tpu.memory_space<vmem>>, vector<1x16x16xf32>
    %109 = vector.shape_cast %108 : vector<1x16x16xf32> to vector<16x16xf32>
    %110 = vector.shape_cast %107 : vector<16x16xf32> to vector<1x16x16xf32>
    tpu.vector_store %arg5[%c0_64, %c8_65, %c112], %110 {strides = array<i32>} : memref<1x32x256xf32, #tpu.memory_space<vmem>>, vector<1x16x16xf32>,
    %111 = vector.extract_strided_slice %78 {offsets = [0, 144], sizes = [16, 16], strides = [1, 1]} : vector<16x286xf32> to vector<16x16xf32>
    %c0_66 = arith.constant 0 : index
    %c8_67 = arith.constant 8 : index
    %c128 = arith.constant 128 : index
    %112 = vector.load %arg5[%c0_66, %c8_67, %c128] : memref<1x32x256xf32, #tpu.memory_space<vmem>>, vector<1x16x16xf32>
    %113 = vector.shape_cast %112 : vector<1x16x16xf32> to vector<16x16xf32>
    %114 = vector.shape_cast %111 : vector<16x16xf32> to vector<1x16x16xf32>
    tpu.vector_store %arg5[%c0_66, %c8_67, %c128], %114 {strides = array<i32>} : memref<1x32x256xf32, #tpu.memory_space<vmem>>, vector<1x16x16xf32>,
    %115 = vector.extract_strided_slice %78 {offsets = [0, 162], sizes = [16, 16], strides = [1, 1]} : vector<16x286xf32> to vector<16x16xf32>
    %c0_68 = arith.constant 0 : index
    %c8_69 = arith.constant 8 : index
    %c144 = arith.constant 144 : index
    %116 = vector.load %arg5[%c0_68, %c8_69, %c144] : memref<1x32x256xf32, #tpu.memory_space<vmem>>, vector<1x16x16xf32>
    %117 = vector.shape_cast %116 : vector<1x16x16xf32> to vector<16x16xf32>
    %118 = vector.shape_cast %115 : vector<16x16xf32> to vector<1x16x16xf32>
    tpu.vector_store %arg5[%c0_68, %c8_69, %c144], %118 {strides = array<i32>} : memref<1x32x256xf32, #tpu.memory_space<vmem>>, vector<1x16x16xf32>,
    %119 = vector.extract_strided_slice %78 {offsets = [0, 180], sizes = [16, 16], strides = [1, 1]} : vector<16x286xf32> to vector<16x16xf32>
    %c0_70 = arith.constant 0 : index
    %c8_71 = arith.constant 8 : index
    %c160 = arith.constant 160 : index
    %120 = vector.load %arg5[%c0_70, %c8_71, %c160] : memref<1x32x256xf32, #tpu.memory_space<vmem>>, vector<1x16x16xf32>
    %121 = vector.shape_cast %120 : vector<1x16x16xf32> to vector<16x16xf32>
    %122 = vector.shape_cast %119 : vector<16x16xf32> to vector<1x16x16xf32>
    tpu.vector_store %arg5[%c0_70, %c8_71, %c160], %122 {strides = array<i32>} : memref<1x32x256xf32, #tpu.memory_space<vmem>>, vector<1x16x16xf32>,
    %123 = vector.extract_strided_slice %78 {offsets = [0, 198], sizes = [16, 16], strides = [1, 1]} : vector<16x286xf32> to vector<16x16xf32>
    %c0_72 = arith.constant 0 : index
    %c8_73 = arith.constant 8 : index
    %c176 = arith.constant 176 : index
    %124 = vector.load %arg5[%c0_72, %c8_73, %c176] : memref<1x32x256xf32, #tpu.memory_space<vmem>>, vector<1x16x16xf32>
    %125 = vector.shape_cast %124 : vector<1x16x16xf32> to vector<16x16xf32>
    %126 = vector.shape_cast %123 : vector<16x16xf32> to vector<1x16x16xf32>
    tpu.vector_store %arg5[%c0_72, %c8_73, %c176], %126 {strides = array<i32>} : memref<1x32x256xf32, #tpu.memory_space<vmem>>, vector<1x16x16xf32>,
    %127 = vector.extract_strided_slice %78 {offsets = [0, 216], sizes = [16, 16], strides = [1, 1]} : vector<16x286xf32> to vector<16x16xf32>
    %c0_74 = arith.constant 0 : index
    %c8_75 = arith.constant 8 : index
    %c192 = arith.constant 192 : index
    %128 = vector.load %arg5[%c0_74, %c8_75, %c192] : memref<1x32x256xf32, #tpu.memory_space<vmem>>, vector<1x16x16xf32>
    %129 = vector.shape_cast %128 : vector<1x16x16xf32> to vector<16x16xf32>
    %130 = vector.shape_cast %127 : vector<16x16xf32> to vector<1x16x16xf32>
    tpu.vector_store %arg5[%c0_74, %c8_75, %c192], %130 {strides = array<i32>} : memref<1x32x256xf32, #tpu.memory_space<vmem>>, vector<1x16x16xf32>,
    %131 = vector.extract_strided_slice %78 {offsets = [0, 234], sizes = [16, 16], strides = [1, 1]} : vector<16x286xf32> to vector<16x16xf32>
    %c0_76 = arith.constant 0 : index
    %c8_77 = arith.constant 8 : index
    %c208 = arith.constant 208 : index
    %132 = vector.load %arg5[%c0_76, %c8_77, %c208] : memref<1x32x256xf32, #tpu.memory_space<vmem>>, vector<1x16x16xf32>
    %133 = vector.shape_cast %132 : vector<1x16x16xf32> to vector<16x16xf32>
    %134 = vector.shape_cast %131 : vector<16x16xf32> to vector<1x16x16xf32>
    tpu.vector_store %arg5[%c0_76, %c8_77, %c208], %134 {strides = array<i32>} : memref<1x32x256xf32, #tpu.memory_space<vmem>>, vector<1x16x16xf32>,
    %135 = vector.extract_strided_slice %78 {offsets = [0, 252], sizes = [16, 16], strides = [1, 1]} : vector<16x286xf32> to vector<16x16xf32>
    %c0_78 = arith.constant 0 : index
    %c8_79 = arith.constant 8 : index
    %c224 = arith.constant 224 : index
    %136 = vector.load %arg5[%c0_78, %c8_79, %c224] : memref<1x32x256xf32, #tpu.memory_space<vmem>>, vector<1x16x16xf32>
    %137 = vector.shape_cast %136 : vector<1x16x16xf32> to vector<16x16xf32>
    %138 = vector.shape_cast %135 : vector<16x16xf32> to vector<1x16x16xf32>
    tpu.vector_store %arg5[%c0_78, %c8_79, %c224], %138 {strides = array<i32>} : memref<1x32x256xf32, #tpu.memory_space<vmem>>, vector<1x16x16xf32>,
    %139 = vector.extract_strided_slice %78 {offsets = [0, 270], sizes = [16, 16], strides = [1, 1]} : vector<16x286xf32> to vector<16x16xf32>
    %c0_80 = arith.constant 0 : index
    %c8_81 = arith.constant 8 : index
    %c240 = arith.constant 240 : index
    %140 = vector.load %arg5[%c0_80, %c8_81, %c240] : memref<1x32x256xf32, #tpu.memory_space<vmem>>, vector<1x16x16xf32>
    %141 = vector.shape_cast %140 : vector<1x16x16xf32> to vector<16x16xf32>
    %142 = vector.shape_cast %139 : vector<16x16xf32> to vector<1x16x16xf32>
    tpu.vector_store %arg5[%c0_80, %c8_81, %c240], %142 {strides = array<i32>} : memref<1x32x256xf32, #tpu.memory_space<vmem>>, vector<1x16x16xf32>,
    %cst_82 = arith.constant 0.000000e+00 : f32
    %143 = vector.broadcast %cst_82 : f32 to vector<8x400xf32>
    %c0_83 = arith.constant 0 : index
    %c0_84 = arith.constant 0 : index
    %144 = vector.load %arg7[%c0_83, %c0_84] : memref<8x400xf32, #tpu.memory_space<vmem>>, vector<8x400xf32>
    tpu.vector_store %arg7[%c0_83, %c0_84], %143 {strides = array<i32>} : memref<8x400xf32, #tpu.memory_space<vmem>>, vector<8x400xf32>,
    %145 = vector.extract_strided_slice %11 {offsets = [0, 0], sizes = [8, 16], strides = [1, 1]} : vector<8x256xf32> to vector<8x16xf32>
    %c0_85 = arith.constant 0 : index
    %c42 = arith.constant 42 : index
    %146 = vector.load %arg7[%c0_85, %c42] : memref<8x400xf32, #tpu.memory_space<vmem>>, vector<8x16xf32>
    tpu.vector_store %arg7[%c0_85, %c42], %145 {strides = array<i32>} : memref<8x400xf32, #tpu.memory_space<vmem>>, vector<8x16xf32>,
    %147 = vector.extract_strided_slice %11 {offsets = [0, 16], sizes = [8, 16], strides = [1, 1]} : vector<8x256xf32> to vector<8x16xf32>
    %c0_86 = arith.constant 0 : index
    %c62 = arith.constant 62 : index
    %148 = vector.load %arg7[%c0_86, %c62] : memref<8x400xf32, #tpu.memory_space<vmem>>, vector<8x16xf32>
    tpu.vector_store %arg7[%c0_86, %c62], %147 {strides = array<i32>} : memref<8x400xf32, #tpu.memory_space<vmem>>, vector<8x16xf32>,
    %149 = vector.extract_strided_slice %11 {offsets = [0, 32], sizes = [8, 16], strides = [1, 1]} : vector<8x256xf32> to vector<8x16xf32>
    %c0_87 = arith.constant 0 : index
    %c82 = arith.constant 82 : index
    %150 = vector.load %arg7[%c0_87, %c82] : memref<8x400xf32, #tpu.memory_space<vmem>>, vector<8x16xf32>
    tpu.vector_store %arg7[%c0_87, %c82], %149 {strides = array<i32>} : memref<8x400xf32, #tpu.memory_space<vmem>>, vector<8x16xf32>,
    %151 = vector.extract_strided_slice %11 {offsets = [0, 48], sizes = [8, 16], strides = [1, 1]} : vector<8x256xf32> to vector<8x16xf32>
    %c0_88 = arith.constant 0 : index
    %c102 = arith.constant 102 : index
    %152 = vector.load %arg7[%c0_88, %c102] : memref<8x400xf32, #tpu.memory_space<vmem>>, vector<8x16xf32>
    tpu.vector_store %arg7[%c0_88, %c102], %151 {strides = array<i32>} : memref<8x400xf32, #tpu.memory_space<vmem>>, vector<8x16xf32>,
    %153 = vector.extract_strided_slice %11 {offsets = [0, 64], sizes = [8, 16], strides = [1, 1]} : vector<8x256xf32> to vector<8x16xf32>
    %c0_89 = arith.constant 0 : index
    %c122 = arith.constant 122 : index
    %154 = vector.load %arg7[%c0_89, %c122] : memref<8x400xf32, #tpu.memory_space<vmem>>, vector<8x16xf32>
    tpu.vector_store %arg7[%c0_89, %c122], %153 {strides = array<i32>} : memref<8x400xf32, #tpu.memory_space<vmem>>, vector<8x16xf32>,
    %155 = vector.extract_strided_slice %11 {offsets = [0, 80], sizes = [8, 16], strides = [1, 1]} : vector<8x256xf32> to vector<8x16xf32>
    %c0_90 = arith.constant 0 : index
    %c142 = arith.constant 142 : index
    %156 = vector.load %arg7[%c0_90, %c142] : memref<8x400xf32, #tpu.memory_space<vmem>>, vector<8x16xf32>
    tpu.vector_store %arg7[%c0_90, %c142], %155 {strides = array<i32>} : memref<8x400xf32, #tpu.memory_space<vmem>>, vector<8x16xf32>,
    %157 = vector.extract_strided_slice %11 {offsets = [0, 96], sizes = [8, 16], strides = [1, 1]} : vector<8x256xf32> to vector<8x16xf32>
    %c0_91 = arith.constant 0 : index
    %c162 = arith.constant 162 : index
    %158 = vector.load %arg7[%c0_91, %c162] : memref<8x400xf32, #tpu.memory_space<vmem>>, vector<8x16xf32>
    tpu.vector_store %arg7[%c0_91, %c162], %157 {strides = array<i32>} : memref<8x400xf32, #tpu.memory_space<vmem>>, vector<8x16xf32>,
    %159 = vector.extract_strided_slice %11 {offsets = [0, 112], sizes = [8, 16], strides = [1, 1]} : vector<8x256xf32> to vector<8x16xf32>
    %c0_92 = arith.constant 0 : index
    %c182 = arith.constant 182 : index
    %160 = vector.load %arg7[%c0_92, %c182] : memref<8x400xf32, #tpu.memory_space<vmem>>, vector<8x16xf32>
    tpu.vector_store %arg7[%c0_92, %c182], %159 {strides = array<i32>} : memref<8x400xf32, #tpu.memory_space<vmem>>, vector<8x16xf32>,
    %161 = vector.extract_strided_slice %11 {offsets = [0, 128], sizes = [8, 16], strides = [1, 1]} : vector<8x256xf32> to vector<8x16xf32>
    %c0_93 = arith.constant 0 : index
    %c202 = arith.constant 202 : index
    %162 = vector.load %arg7[%c0_93, %c202] : memref<8x400xf32, #tpu.memory_space<vmem>>, vector<8x16xf32>
    tpu.vector_store %arg7[%c0_93, %c202], %161 {strides = array<i32>} : memref<8x400xf32, #tpu.memory_space<vmem>>, vector<8x16xf32>,
    %163 = vector.extract_strided_slice %11 {offsets = [0, 144], sizes = [8, 16], strides = [1, 1]} : vector<8x256xf32> to vector<8x16xf32>
    %c0_94 = arith.constant 0 : index
    %c222 = arith.constant 222 : index
    %164 = vector.load %arg7[%c0_94, %c222] : memref<8x400xf32, #tpu.memory_space<vmem>>, vector<8x16xf32>
    tpu.vector_store %arg7[%c0_94, %c222], %163 {strides = array<i32>} : memref<8x400xf32, #tpu.memory_space<vmem>>, vector<8x16xf32>,
    %165 = vector.extract_strided_slice %11 {offsets = [0, 160], sizes = [8, 16], strides = [1, 1]} : vector<8x256xf32> to vector<8x16xf32>
    %c0_95 = arith.constant 0 : index
    %c242 = arith.constant 242 : index
    %166 = vector.load %arg7[%c0_95, %c242] : memref<8x400xf32, #tpu.memory_space<vmem>>, vector<8x16xf32>
    tpu.vector_store %arg7[%c0_95, %c242], %165 {strides = array<i32>} : memref<8x400xf32, #tpu.memory_space<vmem>>, vector<8x16xf32>,
    %167 = vector.extract_strided_slice %11 {offsets = [0, 176], sizes = [8, 16], strides = [1, 1]} : vector<8x256xf32> to vector<8x16xf32>
    %c0_96 = arith.constant 0 : index
    %c262 = arith.constant 262 : index
    %168 = vector.load %arg7[%c0_96, %c262] : memref<8x400xf32, #tpu.memory_space<vmem>>, vector<8x16xf32>
    tpu.vector_store %arg7[%c0_96, %c262], %167 {strides = array<i32>} : memref<8x400xf32, #tpu.memory_space<vmem>>, vector<8x16xf32>,
    %169 = vector.extract_strided_slice %11 {offsets = [0, 192], sizes = [8, 16], strides = [1, 1]} : vector<8x256xf32> to vector<8x16xf32>
    %c0_97 = arith.constant 0 : index
    %c282 = arith.constant 282 : index
    %170 = vector.load %arg7[%c0_97, %c282] : memref<8x400xf32, #tpu.memory_space<vmem>>, vector<8x16xf32>
    tpu.vector_store %arg7[%c0_97, %c282], %169 {strides = array<i32>} : memref<8x400xf32, #tpu.memory_space<vmem>>, vector<8x16xf32>,
    %171 = vector.extract_strided_slice %11 {offsets = [0, 208], sizes = [8, 16], strides = [1, 1]} : vector<8x256xf32> to vector<8x16xf32>
    %c0_98 = arith.constant 0 : index
    %c302 = arith.constant 302 : index
    %172 = vector.load %arg7[%c0_98, %c302] : memref<8x400xf32, #tpu.memory_space<vmem>>, vector<8x16xf32>
    tpu.vector_store %arg7[%c0_98, %c302], %171 {strides = array<i32>} : memref<8x400xf32, #tpu.memory_space<vmem>>, vector<8x16xf32>,
    %173 = vector.extract_strided_slice %11 {offsets = [0, 224], sizes = [8, 16], strides = [1, 1]} : vector<8x256xf32> to vector<8x16xf32>
    %c0_99 = arith.constant 0 : index
    %c322 = arith.constant 322 : index
    %174 = vector.load %arg7[%c0_99, %c322] : memref<8x400xf32, #tpu.memory_space<vmem>>, vector<8x16xf32>
    tpu.vector_store %arg7[%c0_99, %c322], %173 {strides = array<i32>} : memref<8x400xf32, #tpu.memory_space<vmem>>, vector<8x16xf32>,
    %175 = vector.extract_strided_slice %11 {offsets = [0, 240], sizes = [8, 16], strides = [1, 1]} : vector<8x256xf32> to vector<8x16xf32>
    %c0_100 = arith.constant 0 : index
    %c342 = arith.constant 342 : index
    %176 = vector.load %arg7[%c0_100, %c342] : memref<8x400xf32, #tpu.memory_space<vmem>>, vector<8x16xf32>
    tpu.vector_store %arg7[%c0_100, %c342], %175 {strides = array<i32>} : memref<8x400xf32, #tpu.memory_space<vmem>>, vector<8x16xf32>,
    %c0_101 = arith.constant 0 : index
    %c0_102 = arith.constant 0 : index
    %177 = vector.load %arg7[%c0_101, %c0_102] : memref<8x400xf32, #tpu.memory_space<vmem>>, vector<8x400xf32>
    %178 = vector.extract_strided_slice %177 {offsets = [0, 0], sizes = [8, 316], strides = [1, 1]} : vector<8x400xf32> to vector<8x316xf32>
    %179 = arith.truncf %178 : vector<8x316xf32> to vector<8x316xbf16>
    %c0_103 = arith.constant 0 : index
    %c0_104 = arith.constant 0 : index
    %180 = vector.load %arg9[%c0_103, %c0_104] : memref<200x316xbf16, #tpu.memory_space<vmem>>, vector<8x316xbf16>
    tpu.vector_store %arg9[%c0_103, %c0_104], %179 {strides = array<i32>} : memref<200x316xbf16, #tpu.memory_space<vmem>>, vector<8x316xbf16>,
    %181 = vector.extract_strided_slice %177 {offsets = [0, 1], sizes = [8, 316], strides = [1, 1]} : vector<8x400xf32> to vector<8x316xf32>
    %182 = arith.truncf %181 : vector<8x316xf32> to vector<8x316xbf16>
    %c8_105 = arith.constant 8 : index
    %c0_106 = arith.constant 0 : index
    %183 = vector.load %arg9[%c8_105, %c0_106] : memref<200x316xbf16, #tpu.memory_space<vmem>>, vector<8x316xbf16>
    tpu.vector_store %arg9[%c8_105, %c0_106], %182 {strides = array<i32>} : memref<200x316xbf16, #tpu.memory_space<vmem>>, vector<8x316xbf16>,
    %184 = vector.extract_strided_slice %177 {offsets = [0, 2], sizes = [8, 316], strides = [1, 1]} : vector<8x400xf32> to vector<8x316xf32>
    %185 = arith.truncf %184 : vector<8x316xf32> to vector<8x316xbf16>
    %c16_107 = arith.constant 16 : index
    %c0_108 = arith.constant 0 : index
    %186 = vector.load %arg9[%c16_107, %c0_108] : memref<200x316xbf16, #tpu.memory_space<vmem>>, vector<8x316xbf16>
    tpu.vector_store %arg9[%c16_107, %c0_108], %185 {strides = array<i32>} : memref<200x316xbf16, #tpu.memory_space<vmem>>, vector<8x316xbf16>,
    %187 = vector.extract_strided_slice %177 {offsets = [0, 3], sizes = [8, 316], strides = [1, 1]} : vector<8x400xf32> to vector<8x316xf32>
    %188 = arith.truncf %187 : vector<8x316xf32> to vector<8x316xbf16>
    %c24_109 = arith.constant 24 : index
    %c0_110 = arith.constant 0 : index
    %189 = vector.load %arg9[%c24_109, %c0_110] : memref<200x316xbf16, #tpu.memory_space<vmem>>, vector<8x316xbf16>
    tpu.vector_store %arg9[%c24_109, %c0_110], %188 {strides = array<i32>} : memref<200x316xbf16, #tpu.memory_space<vmem>>, vector<8x316xbf16>,
    %190 = vector.extract_strided_slice %177 {offsets = [0, 4], sizes = [8, 316], strides = [1, 1]} : vector<8x400xf32> to vector<8x316xf32>
    %191 = arith.truncf %190 : vector<8x316xf32> to vector<8x316xbf16>
    %c32_111 = arith.constant 32 : index
    %c0_112 = arith.constant 0 : index
    %192 = vector.load %arg9[%c32_111, %c0_112] : memref<200x316xbf16, #tpu.memory_space<vmem>>, vector<8x316xbf16>
    tpu.vector_store %arg9[%c32_111, %c0_112], %191 {strides = array<i32>} : memref<200x316xbf16, #tpu.memory_space<vmem>>, vector<8x316xbf16>,
    %193 = vector.extract_strided_slice %177 {offsets = [0, 20], sizes = [8, 316], strides = [1, 1]} : vector<8x400xf32> to vector<8x316xf32>
    %194 = arith.truncf %193 : vector<8x316xf32> to vector<8x316xbf16>
    %c40_113 = arith.constant 40 : index
    %c0_114 = arith.constant 0 : index
    %195 = vector.load %arg9[%c40_113, %c0_114] : memref<200x316xbf16, #tpu.memory_space<vmem>>, vector<8x316xbf16>
    tpu.vector_store %arg9[%c40_113, %c0_114], %194 {strides = array<i32>} : memref<200x316xbf16, #tpu.memory_space<vmem>>, vector<8x316xbf16>,
    %196 = vector.extract_strided_slice %177 {offsets = [0, 21], sizes = [8, 316], strides = [1, 1]} : vector<8x400xf32> to vector<8x316xf32>
    %197 = arith.truncf %196 : vector<8x316xf32> to vector<8x316xbf16>
    %c48_115 = arith.constant 48 : index
    %c0_116 = arith.constant 0 : index
    %198 = vector.load %arg9[%c48_115, %c0_116] : memref<200x316xbf16, #tpu.memory_space<vmem>>, vector<8x316xbf16>
    tpu.vector_store %arg9[%c48_115, %c0_116], %197 {strides = array<i32>} : memref<200x316xbf16, #tpu.memory_space<vmem>>, vector<8x316xbf16>,
    %199 = vector.extract_strided_slice %177 {offsets = [0, 22], sizes = [8, 316], strides = [1, 1]} : vector<8x400xf32> to vector<8x316xf32>
    %200 = arith.truncf %199 : vector<8x316xf32> to vector<8x316xbf16>
    %c56_117 = arith.constant 56 : index
    %c0_118 = arith.constant 0 : index
    %201 = vector.load %arg9[%c56_117, %c0_118] : memref<200x316xbf16, #tpu.memory_space<vmem>>, vector<8x316xbf16>
    tpu.vector_store %arg9[%c56_117, %c0_118], %200 {strides = array<i32>} : memref<200x316xbf16, #tpu.memory_space<vmem>>, vector<8x316xbf16>,
    %202 = vector.extract_strided_slice %177 {offsets = [0, 23], sizes = [8, 316], strides = [1, 1]} : vector<8x400xf32> to vector<8x316xf32>
    %203 = arith.truncf %202 : vector<8x316xf32> to vector<8x316xbf16>
    %c64_119 = arith.constant 64 : index
    %c0_120 = arith.constant 0 : index
    %204 = vector.load %arg9[%c64_119, %c0_120] : memref<200x316xbf16, #tpu.memory_space<vmem>>, vector<8x316xbf16>
    tpu.vector_store %arg9[%c64_119, %c0_120], %203 {strides = array<i32>} : memref<200x316xbf16, #tpu.memory_space<vmem>>, vector<8x316xbf16>,
    %205 = vector.extract_strided_slice %177 {offsets = [0, 24], sizes = [8, 316], strides = [1, 1]} : vector<8x400xf32> to vector<8x316xf32>
    %206 = arith.truncf %205 : vector<8x316xf32> to vector<8x316xbf16>
    %c72 = arith.constant 72 : index
    %c0_121 = arith.constant 0 : index
    %207 = vector.load %arg9[%c72, %c0_121] : memref<200x316xbf16, #tpu.memory_space<vmem>>, vector<8x316xbf16>
    tpu.vector_store %arg9[%c72, %c0_121], %206 {strides = array<i32>} : memref<200x316xbf16, #tpu.memory_space<vmem>>, vector<8x316xbf16>,
    %208 = vector.extract_strided_slice %177 {offsets = [0, 40], sizes = [8, 316], strides = [1, 1]} : vector<8x400xf32> to vector<8x316xf32>
    %209 = arith.truncf %208 : vector<8x316xf32> to vector<8x316xbf16>
    %c80_122 = arith.constant 80 : index
    %c0_123 = arith.constant 0 : index
    %210 = vector.load %arg9[%c80_122, %c0_123] : memref<200x316xbf16, #tpu.memory_space<vmem>>, vector<8x316xbf16>
    tpu.vector_store %arg9[%c80_122, %c0_123], %209 {strides = array<i32>} : memref<200x316xbf16, #tpu.memory_space<vmem>>, vector<8x316xbf16>,
    %211 = vector.extract_strided_slice %177 {offsets = [0, 41], sizes = [8, 316], strides = [1, 1]} : vector<8x400xf32> to vector<8x316xf32>
    %212 = arith.truncf %211 : vector<8x316xf32> to vector<8x316xbf16>
    %c88 = arith.constant 88 : index
    %c0_124 = arith.constant 0 : index
    %213 = vector.load %arg9[%c88, %c0_124] : memref<200x316xbf16, #tpu.memory_space<vmem>>, vector<8x316xbf16>
    tpu.vector_store %arg9[%c88, %c0_124], %212 {strides = array<i32>} : memref<200x316xbf16, #tpu.memory_space<vmem>>, vector<8x316xbf16>,
    %214 = vector.extract_strided_slice %177 {offsets = [0, 42], sizes = [8, 316], strides = [1, 1]} : vector<8x400xf32> to vector<8x316xf32>
    %215 = arith.truncf %214 : vector<8x316xf32> to vector<8x316xbf16>
    %c96_125 = arith.constant 96 : index
    %c0_126 = arith.constant 0 : index
    %216 = vector.load %arg9[%c96_125, %c0_126] : memref<200x316xbf16, #tpu.memory_space<vmem>>, vector<8x316xbf16>
    tpu.vector_store %arg9[%c96_125, %c0_126], %215 {strides = array<i32>} : memref<200x316xbf16, #tpu.memory_space<vmem>>, vector<8x316xbf16>,
    %217 = vector.extract_strided_slice %177 {offsets = [0, 43], sizes = [8, 316], strides = [1, 1]} : vector<8x400xf32> to vector<8x316xf32>
    %218 = arith.truncf %217 : vector<8x316xf32> to vector<8x316xbf16>
    %c104 = arith.constant 104 : index
    %c0_127 = arith.constant 0 : index
    %219 = vector.load %arg9[%c104, %c0_127] : memref<200x316xbf16, #tpu.memory_space<vmem>>, vector<8x316xbf16>
    tpu.vector_store %arg9[%c104, %c0_127], %218 {strides = array<i32>} : memref<200x316xbf16, #tpu.memory_space<vmem>>, vector<8x316xbf16>,
    %220 = vector.extract_strided_slice %177 {offsets = [0, 44], sizes = [8, 316], strides = [1, 1]} : vector<8x400xf32> to vector<8x316xf32>
    %221 = arith.truncf %220 : vector<8x316xf32> to vector<8x316xbf16>
    %c112_128 = arith.constant 112 : index
    %c0_129 = arith.constant 0 : index
    %222 = vector.load %arg9[%c112_128, %c0_129] : memref<200x316xbf16, #tpu.memory_space<vmem>>, vector<8x316xbf16>
    tpu.vector_store %arg9[%c112_128, %c0_129], %221 {strides = array<i32>} : memref<200x316xbf16, #tpu.memory_space<vmem>>, vector<8x316xbf16>,
    %223 = vector.extract_strided_slice %177 {offsets = [0, 60], sizes = [8, 316], strides = [1, 1]} : vector<8x400xf32> to vector<8x316xf32>
    %224 = arith.truncf %223 : vector<8x316xf32> to vector<8x316xbf16>
    %c120 = arith.constant 120 : index
    %c0_130 = arith.constant 0 : index
    %225 = vector.load %arg9[%c120, %c0_130] : memref<200x316xbf16, #tpu.memory_space<vmem>>, vector<8x316xbf16>
    tpu.vector_store %arg9[%c120, %c0_130], %224 {strides = array<i32>} : memref<200x316xbf16, #tpu.memory_space<vmem>>, vector<8x316xbf16>,
    %226 = vector.extract_strided_slice %177 {offsets = [0, 61], sizes = [8, 316], strides = [1, 1]} : vector<8x400xf32> to vector<8x316xf32>
    %227 = arith.truncf %226 : vector<8x316xf32> to vector<8x316xbf16>
    %c128_131 = arith.constant 128 : index
    %c0_132 = arith.constant 0 : index
    %228 = vector.load %arg9[%c128_131, %c0_132] : memref<200x316xbf16, #tpu.memory_space<vmem>>, vector<8x316xbf16>
    tpu.vector_store %arg9[%c128_131, %c0_132], %227 {strides = array<i32>} : memref<200x316xbf16, #tpu.memory_space<vmem>>, vector<8x316xbf16>,
    %229 = vector.extract_strided_slice %177 {offsets = [0, 62], sizes = [8, 316], strides = [1, 1]} : vector<8x400xf32> to vector<8x316xf32>
    %230 = arith.truncf %229 : vector<8x316xf32> to vector<8x316xbf16>
    %c136 = arith.constant 136 : index
    %c0_133 = arith.constant 0 : index
    %231 = vector.load %arg9[%c136, %c0_133] : memref<200x316xbf16, #tpu.memory_space<vmem>>, vector<8x316xbf16>
    tpu.vector_store %arg9[%c136, %c0_133], %230 {strides = array<i32>} : memref<200x316xbf16, #tpu.memory_space<vmem>>, vector<8x316xbf16>,
    %232 = vector.extract_strided_slice %177 {offsets = [0, 63], sizes = [8, 316], strides = [1, 1]} : vector<8x400xf32> to vector<8x316xf32>
    %233 = arith.truncf %232 : vector<8x316xf32> to vector<8x316xbf16>
    %c144_134 = arith.constant 144 : index
    %c0_135 = arith.constant 0 : index
    %234 = vector.load %arg9[%c144_134, %c0_135] : memref<200x316xbf16, #tpu.memory_space<vmem>>, vector<8x316xbf16>
    tpu.vector_store %arg9[%c144_134, %c0_135], %233 {strides = array<i32>} : memref<200x316xbf16, #tpu.memory_space<vmem>>, vector<8x316xbf16>,
    %235 = vector.extract_strided_slice %177 {offsets = [0, 64], sizes = [8, 316], strides = [1, 1]} : vector<8x400xf32> to vector<8x316xf32>
    %236 = arith.truncf %235 : vector<8x316xf32> to vector<8x316xbf16>
    %c152 = arith.constant 152 : index
    %c0_136 = arith.constant 0 : index
    %237 = vector.load %arg9[%c152, %c0_136] : memref<200x316xbf16, #tpu.memory_space<vmem>>, vector<8x316xbf16>
    tpu.vector_store %arg9[%c152, %c0_136], %236 {strides = array<i32>} : memref<200x316xbf16, #tpu.memory_space<vmem>>, vector<8x316xbf16>,
    %238 = vector.extract_strided_slice %177 {offsets = [0, 80], sizes = [8, 316], strides = [1, 1]} : vector<8x400xf32> to vector<8x316xf32>
    %239 = arith.truncf %238 : vector<8x316xf32> to vector<8x316xbf16>
    %c160_137 = arith.constant 160 : index
    %c0_138 = arith.constant 0 : index
    %240 = vector.load %arg9[%c160_137, %c0_138] : memref<200x316xbf16, #tpu.memory_space<vmem>>, vector<8x316xbf16>
    tpu.vector_store %arg9[%c160_137, %c0_138], %239 {strides = array<i32>} : memref<200x316xbf16, #tpu.memory_space<vmem>>, vector<8x316xbf16>,
    %241 = vector.extract_strided_slice %177 {offsets = [0, 81], sizes = [8, 316], strides = [1, 1]} : vector<8x400xf32> to vector<8x316xf32>
    %242 = arith.truncf %241 : vector<8x316xf32> to vector<8x316xbf16>
    %c168 = arith.constant 168 : index
    %c0_139 = arith.constant 0 : index
    %243 = vector.load %arg9[%c168, %c0_139] : memref<200x316xbf16, #tpu.memory_space<vmem>>, vector<8x316xbf16>
    tpu.vector_store %arg9[%c168, %c0_139], %242 {strides = array<i32>} : memref<200x316xbf16, #tpu.memory_space<vmem>>, vector<8x316xbf16>,
    %244 = vector.extract_strided_slice %177 {offsets = [0, 82], sizes = [8, 316], strides = [1, 1]} : vector<8x400xf32> to vector<8x316xf32>
    %245 = arith.truncf %244 : vector<8x316xf32> to vector<8x316xbf16>
    %c176_140 = arith.constant 176 : index
    %c0_141 = arith.constant 0 : index
    %246 = vector.load %arg9[%c176_140, %c0_141] : memref<200x316xbf16, #tpu.memory_space<vmem>>, vector<8x316xbf16>
    tpu.vector_store %arg9[%c176_140, %c0_141], %245 {strides = array<i32>} : memref<200x316xbf16, #tpu.memory_space<vmem>>, vector<8x316xbf16>,
    %247 = vector.extract_strided_slice %177 {offsets = [0, 83], sizes = [8, 316], strides = [1, 1]} : vector<8x400xf32> to vector<8x316xf32>
    %248 = arith.truncf %247 : vector<8x316xf32> to vector<8x316xbf16>
    %c184 = arith.constant 184 : index
    %c0_142 = arith.constant 0 : index
    %249 = vector.load %arg9[%c184, %c0_142] : memref<200x316xbf16, #tpu.memory_space<vmem>>, vector<8x316xbf16>
    tpu.vector_store %arg9[%c184, %c0_142], %248 {strides = array<i32>} : memref<200x316xbf16, #tpu.memory_space<vmem>>, vector<8x316xbf16>,
    %250 = vector.extract_strided_slice %177 {offsets = [0, 84], sizes = [8, 316], strides = [1, 1]} : vector<8x400xf32> to vector<8x316xf32>
    %251 = arith.truncf %250 : vector<8x316xf32> to vector<8x316xbf16>
    %c192_143 = arith.constant 192 : index
    %c0_144 = arith.constant 0 : index
    %252 = vector.load %arg9[%c192_143, %c0_144] : memref<200x316xbf16, #tpu.memory_space<vmem>>, vector<8x316xbf16>
    tpu.vector_store %arg9[%c192_143, %c0_144], %251 {strides = array<i32>} : memref<200x316xbf16, #tpu.memory_space<vmem>>, vector<8x316xbf16>,
    %c0_145 = arith.constant 0 : index
    %c0_146 = arith.constant 0 : index
    %253 = vector.load %arg4[%c0_145, %c0_146] : memref<8x200xbf16, #tpu.memory_space<vmem>>, vector<8x200xbf16>
    %c0_147 = arith.constant 0 : index
    %c0_148 = arith.constant 0 : index
    %254 = vector.load %arg9[%c0_147, %c0_148] : memref<200x316xbf16, #tpu.memory_space<vmem>>, vector<200x316xbf16>
    %cst_149 = arith.constant dense<0.000000e+00> : vector<8x316xf32>
    %255 = tpu.matmul %253, %254, %cst_149 {dimension_numbers = #tpu.dot_dimension_numbers<[1], [0], [0], [1], [0, 0, 1, 1], [], []>} : vector<8x200xbf16>, vector<200x316xbf16>, vector<8x316xf32> -> vector<8x316xf32>
    %cst_150 = arith.constant 0.000000e+00 : f32
    %256 = vector.broadcast %cst_150 : f32 to vector<8x316xf32>
    %257 = arith.maximumf %255, %256 : vector<8x316xf32>
    %258 = vector.extract_strided_slice %257 {offsets = [0, 0], sizes = [8, 16], strides = [1, 1]} : vector<8x316xf32> to vector<8x16xf32>
    %c0_151 = arith.constant 0 : index
    %c24_152 = arith.constant 24 : index
    %c0_153 = arith.constant 0 : index
    %259 = vector.load %arg5[%c0_151, %c24_152, %c0_153] : memref<1x32x256xf32, #tpu.memory_space<vmem>>, vector<1x8x16xf32>
    %260 = vector.shape_cast %259 : vector<1x8x16xf32> to vector<8x16xf32>
    %261 = vector.shape_cast %258 : vector<8x16xf32> to vector<1x8x16xf32>
    tpu.vector_store %arg5[%c0_151, %c24_152, %c0_153], %261 {strides = array<i32>} : memref<1x32x256xf32, #tpu.memory_space<vmem>>, vector<1x8x16xf32>,
    %262 = vector.extract_strided_slice %257 {offsets = [0, 20], sizes = [8, 16], strides = [1, 1]} : vector<8x316xf32> to vector<8x16xf32>
    %c0_154 = arith.constant 0 : index
    %c24_155 = arith.constant 24 : index
    %c16_156 = arith.constant 16 : index
    %263 = vector.load %arg5[%c0_154, %c24_155, %c16_156] : memref<1x32x256xf32, #tpu.memory_space<vmem>>, vector<1x8x16xf32>
    %264 = vector.shape_cast %263 : vector<1x8x16xf32> to vector<8x16xf32>
    %265 = vector.shape_cast %262 : vector<8x16xf32> to vector<1x8x16xf32>
    tpu.vector_store %arg5[%c0_154, %c24_155, %c16_156], %265 {strides = array<i32>} : memref<1x32x256xf32, #tpu.memory_space<vmem>>, vector<1x8x16xf32>,
    %266 = vector.extract_strided_slice %257 {offsets = [0, 40], sizes = [8, 16], strides = [1, 1]} : vector<8x316xf32> to vector<8x16xf32>
    %c0_157 = arith.constant 0 : index
    %c24_158 = arith.constant 24 : index
    %c32_159 = arith.constant 32 : index
    %267 = vector.load %arg5[%c0_157, %c24_158, %c32_159] : memref<1x32x256xf32, #tpu.memory_space<vmem>>, vector<1x8x16xf32>
    %268 = vector.shape_cast %267 : vector<1x8x16xf32> to vector<8x16xf32>
    %269 = vector.shape_cast %266 : vector<8x16xf32> to vector<1x8x16xf32>
    tpu.vector_store %arg5[%c0_157, %c24_158, %c32_159], %269 {strides = array<i32>} : memref<1x32x256xf32, #tpu.memory_space<vmem>>, vector<1x8x16xf32>,
    %270 = vector.extract_strided_slice %257 {offsets = [0, 60], sizes = [8, 16], strides = [1, 1]} : vector<8x316xf32> to vector<8x16xf32>
    %c0_160 = arith.constant 0 : index
    %c24_161 = arith.constant 24 : index
    %c48_162 = arith.constant 48 : index
    %271 = vector.load %arg5[%c0_160, %c24_161, %c48_162] : memref<1x32x256xf32, #tpu.memory_space<vmem>>, vector<1x8x16xf32>
    %272 = vector.shape_cast %271 : vector<1x8x16xf32> to vector<8x16xf32>
    %273 = vector.shape_cast %270 : vector<8x16xf32> to vector<1x8x16xf32>
    tpu.vector_store %arg5[%c0_160, %c24_161, %c48_162], %273 {strides = array<i32>} : memref<1x32x256xf32, #tpu.memory_space<vmem>>, vector<1x8x16xf32>,
    %274 = vector.extract_strided_slice %257 {offsets = [0, 80], sizes = [8, 16], strides = [1, 1]} : vector<8x316xf32> to vector<8x16xf32>
    %c0_163 = arith.constant 0 : index
    %c24_164 = arith.constant 24 : index
    %c64_165 = arith.constant 64 : index
    %275 = vector.load %arg5[%c0_163, %c24_164, %c64_165] : memref<1x32x256xf32, #tpu.memory_space<vmem>>, vector<1x8x16xf32>
    %276 = vector.shape_cast %275 : vector<1x8x16xf32> to vector<8x16xf32>
    %277 = vector.shape_cast %274 : vector<8x16xf32> to vector<1x8x16xf32>
    tpu.vector_store %arg5[%c0_163, %c24_164, %c64_165], %277 {strides = array<i32>} : memref<1x32x256xf32, #tpu.memory_space<vmem>>, vector<1x8x16xf32>,
    %278 = vector.extract_strided_slice %257 {offsets = [0, 100], sizes = [8, 16], strides = [1, 1]} : vector<8x316xf32> to vector<8x16xf32>
    %c0_166 = arith.constant 0 : index
    %c24_167 = arith.constant 24 : index
    %c80_168 = arith.constant 80 : index
    %279 = vector.load %arg5[%c0_166, %c24_167, %c80_168] : memref<1x32x256xf32, #tpu.memory_space<vmem>>, vector<1x8x16xf32>
    %280 = vector.shape_cast %279 : vector<1x8x16xf32> to vector<8x16xf32>
    %281 = vector.shape_cast %278 : vector<8x16xf32> to vector<1x8x16xf32>
    tpu.vector_store %arg5[%c0_166, %c24_167, %c80_168], %281 {strides = array<i32>} : memref<1x32x256xf32, #tpu.memory_space<vmem>>, vector<1x8x16xf32>,
    %282 = vector.extract_strided_slice %257 {offsets = [0, 120], sizes = [8, 16], strides = [1, 1]} : vector<8x316xf32> to vector<8x16xf32>
    %c0_169 = arith.constant 0 : index
    %c24_170 = arith.constant 24 : index
    %c96_171 = arith.constant 96 : index
    %283 = vector.load %arg5[%c0_169, %c24_170, %c96_171] : memref<1x32x256xf32, #tpu.memory_space<vmem>>, vector<1x8x16xf32>
    %284 = vector.shape_cast %283 : vector<1x8x16xf32> to vector<8x16xf32>
    %285 = vector.shape_cast %282 : vector<8x16xf32> to vector<1x8x16xf32>
    tpu.vector_store %arg5[%c0_169, %c24_170, %c96_171], %285 {strides = array<i32>} : memref<1x32x256xf32, #tpu.memory_space<vmem>>, vector<1x8x16xf32>,
    %286 = vector.extract_strided_slice %257 {offsets = [0, 140], sizes = [8, 16], strides = [1, 1]} : vector<8x316xf32> to vector<8x16xf32>
    %c0_172 = arith.constant 0 : index
    %c24_173 = arith.constant 24 : index
    %c112_174 = arith.constant 112 : index
    %287 = vector.load %arg5[%c0_172, %c24_173, %c112_174] : memref<1x32x256xf32, #tpu.memory_space<vmem>>, vector<1x8x16xf32>
    %288 = vector.shape_cast %287 : vector<1x8x16xf32> to vector<8x16xf32>
    %289 = vector.shape_cast %286 : vector<8x16xf32> to vector<1x8x16xf32>
    tpu.vector_store %arg5[%c0_172, %c24_173, %c112_174], %289 {strides = array<i32>} : memref<1x32x256xf32, #tpu.memory_space<vmem>>, vector<1x8x16xf32>,
    %290 = vector.extract_strided_slice %257 {offsets = [0, 160], sizes = [8, 16], strides = [1, 1]} : vector<8x316xf32> to vector<8x16xf32>
    %c0_175 = arith.constant 0 : index
    %c24_176 = arith.constant 24 : index
    %c128_177 = arith.constant 128 : index
    %291 = vector.load %arg5[%c0_175, %c24_176, %c128_177] : memref<1x32x256xf32, #tpu.memory_space<vmem>>, vector<1x8x16xf32>
    %292 = vector.shape_cast %291 : vector<1x8x16xf32> to vector<8x16xf32>
    %293 = vector.shape_cast %290 : vector<8x16xf32> to vector<1x8x16xf32>
    tpu.vector_store %arg5[%c0_175, %c24_176, %c128_177], %293 {strides = array<i32>} : memref<1x32x256xf32, #tpu.memory_space<vmem>>, vector<1x8x16xf32>,
    %294 = vector.extract_strided_slice %257 {offsets = [0, 180], sizes = [8, 16], strides = [1, 1]} : vector<8x316xf32> to vector<8x16xf32>
    %c0_178 = arith.constant 0 : index
    %c24_179 = arith.constant 24 : index
    %c144_180 = arith.constant 144 : index
    %295 = vector.load %arg5[%c0_178, %c24_179, %c144_180] : memref<1x32x256xf32, #tpu.memory_space<vmem>>, vector<1x8x16xf32>
    %296 = vector.shape_cast %295 : vector<1x8x16xf32> to vector<8x16xf32>
    %297 = vector.shape_cast %294 : vector<8x16xf32> to vector<1x8x16xf32>
    tpu.vector_store %arg5[%c0_178, %c24_179, %c144_180], %297 {strides = array<i32>} : memref<1x32x256xf32, #tpu.memory_space<vmem>>, vector<1x8x16xf32>,
    %298 = vector.extract_strided_slice %257 {offsets = [0, 200], sizes = [8, 16], strides = [1, 1]} : vector<8x316xf32> to vector<8x16xf32>
    %c0_181 = arith.constant 0 : index
    %c24_182 = arith.constant 24 : index
    %c160_183 = arith.constant 160 : index
    %299 = vector.load %arg5[%c0_181, %c24_182, %c160_183] : memref<1x32x256xf32, #tpu.memory_space<vmem>>, vector<1x8x16xf32>
    %300 = vector.shape_cast %299 : vector<1x8x16xf32> to vector<8x16xf32>
    %301 = vector.shape_cast %298 : vector<8x16xf32> to vector<1x8x16xf32>
    tpu.vector_store %arg5[%c0_181, %c24_182, %c160_183], %301 {strides = array<i32>} : memref<1x32x256xf32, #tpu.memory_space<vmem>>, vector<1x8x16xf32>,
    %302 = vector.extract_strided_slice %257 {offsets = [0, 220], sizes = [8, 16], strides = [1, 1]} : vector<8x316xf32> to vector<8x16xf32>
    %c0_184 = arith.constant 0 : index
    %c24_185 = arith.constant 24 : index
    %c176_186 = arith.constant 176 : index
    %303 = vector.load %arg5[%c0_184, %c24_185, %c176_186] : memref<1x32x256xf32, #tpu.memory_space<vmem>>, vector<1x8x16xf32>
    %304 = vector.shape_cast %303 : vector<1x8x16xf32> to vector<8x16xf32>
    %305 = vector.shape_cast %302 : vector<8x16xf32> to vector<1x8x16xf32>
    tpu.vector_store %arg5[%c0_184, %c24_185, %c176_186], %305 {strides = array<i32>} : memref<1x32x256xf32, #tpu.memory_space<vmem>>, vector<1x8x16xf32>,
    %306 = vector.extract_strided_slice %257 {offsets = [0, 240], sizes = [8, 16], strides = [1, 1]} : vector<8x316xf32> to vector<8x16xf32>
    %c0_187 = arith.constant 0 : index
    %c24_188 = arith.constant 24 : index
    %c192_189 = arith.constant 192 : index
    %307 = vector.load %arg5[%c0_187, %c24_188, %c192_189] : memref<1x32x256xf32, #tpu.memory_space<vmem>>, vector<1x8x16xf32>
    %308 = vector.shape_cast %307 : vector<1x8x16xf32> to vector<8x16xf32>
    %309 = vector.shape_cast %306 : vector<8x16xf32> to vector<1x8x16xf32>
    tpu.vector_store %arg5[%c0_187, %c24_188, %c192_189], %309 {strides = array<i32>} : memref<1x32x256xf32, #tpu.memory_space<vmem>>, vector<1x8x16xf32>,
    %310 = vector.extract_strided_slice %257 {offsets = [0, 260], sizes = [8, 16], strides = [1, 1]} : vector<8x316xf32> to vector<8x16xf32>
    %c0_190 = arith.constant 0 : index
    %c24_191 = arith.constant 24 : index
    %c208_192 = arith.constant 208 : index
    %311 = vector.load %arg5[%c0_190, %c24_191, %c208_192] : memref<1x32x256xf32, #tpu.memory_space<vmem>>, vector<1x8x16xf32>
    %312 = vector.shape_cast %311 : vector<1x8x16xf32> to vector<8x16xf32>
    %313 = vector.shape_cast %310 : vector<8x16xf32> to vector<1x8x16xf32>
    tpu.vector_store %arg5[%c0_190, %c24_191, %c208_192], %313 {strides = array<i32>} : memref<1x32x256xf32, #tpu.memory_space<vmem>>, vector<1x8x16xf32>,
    %314 = vector.extract_strided_slice %257 {offsets = [0, 280], sizes = [8, 16], strides = [1, 1]} : vector<8x316xf32> to vector<8x16xf32>
    %c0_193 = arith.constant 0 : index
    %c24_194 = arith.constant 24 : index
    %c224_195 = arith.constant 224 : index
    %315 = vector.load %arg5[%c0_193, %c24_194, %c224_195] : memref<1x32x256xf32, #tpu.memory_space<vmem>>, vector<1x8x16xf32>
    %316 = vector.shape_cast %315 : vector<1x8x16xf32> to vector<8x16xf32>
    %317 = vector.shape_cast %314 : vector<8x16xf32> to vector<1x8x16xf32>
    tpu.vector_store %arg5[%c0_193, %c24_194, %c224_195], %317 {strides = array<i32>} : memref<1x32x256xf32, #tpu.memory_space<vmem>>, vector<1x8x16xf32>,
    %318 = vector.extract_strided_slice %257 {offsets = [0, 300], sizes = [8, 16], strides = [1, 1]} : vector<8x316xf32> to vector<8x16xf32>
    %c0_196 = arith.constant 0 : index
    %c24_197 = arith.constant 24 : index
    %c240_198 = arith.constant 240 : index
    %319 = vector.load %arg5[%c0_196, %c24_197, %c240_198] : memref<1x32x256xf32, #tpu.memory_space<vmem>>, vector<1x8x16xf32>
    %320 = vector.shape_cast %319 : vector<1x8x16xf32> to vector<8x16xf32>
    %321 = vector.shape_cast %318 : vector<8x16xf32> to vector<1x8x16xf32>
    tpu.vector_store %arg5[%c0_196, %c24_197, %c240_198], %321 {strides = array<i32>} : memref<1x32x256xf32, #tpu.memory_space<vmem>>, vector<1x8x16xf32>,
    return
  }
  func.func @transform_0(%arg0: i32) -> (i32, i32, i32) {
    %c0_i32 = arith.constant 0 : i32
    %c0_i32_0 = arith.constant 0 : i32
    %c0_i32_1 = arith.constant 0 : i32
    return %arg0, %c0_i32, %c0_i32_0 : i32, i32, i32
  }
  func.func @transform_1(%arg0: i32) -> (i32, i32) {
    %c0_i32 = arith.constant 0 : i32
    %c0_i32_0 = arith.constant 0 : i32
    %c0_i32_1 = arith.constant 0 : i32
    return %c0_i32, %c0_i32_0 : i32, i32
  }
  func.func @transform_2(%arg0: i32) -> (i32, i32) {
    %c0_i32 = arith.constant 0 : i32
    %c0_i32_0 = arith.constant 0 : i32
    %c0_i32_1 = arith.constant 0 : i32
    return %c0_i32, %c0_i32_0 : i32, i32
  }
  func.func @transform_3(%arg0: i32) -> (i32, i32) {
    %c0_i32 = arith.constant 0 : i32
    %c0_i32_0 = arith.constant 0 : i32
    %c0_i32_1 = arith.constant 0 : i32
    return %c0_i32, %c0_i32_0 : i32, i32
  }
  func.func @transform_4(%arg0: i32) -> (i32, i32, i32) {
    %c0_i32 = arith.constant 0 : i32
    %c0_i32_0 = arith.constant 0 : i32
    %c0_i32_1 = arith.constant 0 : i32
    return %arg0, %c0_i32, %c0_i32_0 : i32, i32, i32
  }
}

</mosaic_0001>

<llo_original>
// kernel: inception_block_light.1
$region0: #{inception_block_light.1}
  #allocation0 [shape = 'u32[]', space=smem, size = 0x4, offset = 0x4, fixed_abs, tag = 'smem constant byte address 0x4 - core index']
  #allocation1 [shape = 'u32[144,128]{1,0:T(1,128)}', space=vmem, size = 0x12000, scoped, tag = 'internal scratch']
  #allocation2 [shape = 'f32[8,324]{1,0:T(8,128)}', space=vmem, size = 0x3000, scoped, tag = 'scratch operand']
  #allocation3 [shape = 'f32[8,400]{1,0:T(8,128)}', space=vmem, size = 0x4000, scoped, tag = 'scratch operand']
  #allocation4 [shape = 'bf16[72,286]{1,0:T(8,128)(2,1)}', space=vmem, size = 0xd800, scoped, tag = 'scratch operand']
  #allocation5 [shape = 'bf16[200,316]{1,0:T(8,128)(2,1)}', space=vmem, size = 0x25800, scoped, tag = 'scratch operand']
  %s0 = inlined_call_operand.vmem [shape: bf16[2,4,256], index: 0, kind: input, shape index: {}]
  %s1 = inlined_call_operand.vmem [shape: bf16[24,4], index: 1, kind: input, shape index: {}]
  %s2 = inlined_call_operand.vmem [shape: bf16[16,72], index: 2, kind: input, shape index: {}]
  %s3 = inlined_call_operand.vmem [shape: bf16[8,200], index: 3, kind: input, shape index: {}]
  %s4 = inlined_call_operand.vmem [shape: f32[2,32,256], index: 4, kind: output, shape index: {}]
  %s5 = sld [smem:[#allocation0]]
  $region49: #{inception_block_light.1} parent=0
    _
  %s7 = ssub.s32 1, %s5
  %s8 = scalar_select 0, %s7, %s5
  loop: start=0, step=1, limit=4
  $region2: #{inception_block_light.1} parent=0 // loop_pre_header
    _
  $region3: #{inception_block_light.1} parent=0 // loop_header
    %s10 = sphi 0, %s14
    %p11 = scmp.ge.s32.totalorder %s10, 4
    %s20 = sphi 0, %s22
    %s23 = sphi 0, %s20
    %s24 = sphi 0, %s23
    %s40 = sphi 0, %s24
    %s44 = sphi 0, %s44
    %s46 = sphi 0, %s44
    %s47 = sphi 0, %s46
    %s61 = sphi 0, %s47
    %s65 = sphi 0, %s65
    %s67 = sphi 0, %s65
    %s68 = sphi 0, %s67
    %s82 = sphi 0, %s68
    %s86 = sphi 0, %s86
    %s88 = sphi 0, %s86
    %s89 = sphi 0, %s88
    %s103 = sphi 0, %s89
    %s109 = sphi 0, %s111
    %s112 = sphi 0, %s109
    %s113 = sphi 0, %s112
    %s129 = sphi 0, %s113
  $region4: #{inception_block_light.1} parent=0 // loop_header_branch
    %13 = sbr.rel (%p11) target = $region8
  $region5: #{inception_block_light.1} parent=0 // loop_body
    %s15 = ssub.s32 %s10, 1
    %s16 = ssub.s32 %s10, 2
    %s17 = sadd.s32 %s10, 1
    %s18 = ssub.s32 %s10, %s17
    %p19 = scmp.eq.s32.totalorder %s18, 0
    %s21 = sadd.s32 %s20, 1
    %s22 = scalar_select %p19, %s20, %s21
    %p25 = pneg %p19
    %p26 = scmp.eq.s32.totalorder %s10, 1
    %p27 = por %p25, %p26
    %p28 = scmp.ne.s32.totalorder %s20, %s23
    %p29 = scmp.eq.s32.totalorder %s10, 0
    %p30 = por %p28, %p29
    %p31 = scmp.ne.s32.totalorder %s20, %s23
    %p32 = scmp.eq.s32.totalorder %s15, 1
    %p33 = por %p31, %p32
    %p34 = scmp.ne.s32.totalorder %s23, %s24
    %p35 = scmp.eq.s32.totalorder %s15, 0
    %p36 = por %p34, %p35
    %p37 = scmp.ne.s32.totalorder %s23, %s24
    %p38 = scmp.eq.s32.totalorder %s16, 1
    %p39 = por %p37, %p38
    %p41 = scmp.ne.s32.totalorder %s24, %s40
    %p42 = scmp.eq.s32.totalorder %s16, 0
    %p43 = por %p41, %p42
    %s45 = sadd.s32 %s44, 1
    %p48 = scmp.eq.s32.totalorder %s10, 1
    %p49 = scmp.ne.s32.totalorder %s44, %s46
    %p50 = scmp.eq.s32.totalorder %s10, 0
    %p51 = por %p49, %p50
    %p52 = scmp.ne.s32.totalorder %s44, %s46
    %p53 = scmp.eq.s32.totalorder %s15, 1
    %p54 = por %p52, %p53
    %p55 = scmp.ne.s32.totalorder %s46, %s47
    %p56 = scmp.eq.s32.totalorder %s15, 0
    %p57 = por %p55, %p56
    %p58 = scmp.ne.s32.totalorder %s46, %s47
    %p59 = scmp.eq.s32.totalorder %s16, 1
    %p60 = por %p58, %p59
    %p62 = scmp.ne.s32.totalorder %s47, %s61
    %p63 = scmp.eq.s32.totalorder %s16, 0
    %p64 = por %p62, %p63
    %s66 = sadd.s32 %s65, 1
    %p69 = scmp.eq.s32.totalorder %s10, 1
    %p70 = scmp.ne.s32.totalorder %s65, %s67
    %p71 = scmp.eq.s32.totalorder %s10, 0
    %p72 = por %p70, %p71
    %p73 = scmp.ne.s32.totalorder %s65, %s67
    %p74 = scmp.eq.s32.totalorder %s15, 1
    %p75 = por %p73, %p74
    %p76 = scmp.ne.s32.totalorder %s67, %s68
    %p77 = scmp.eq.s32.totalorder %s15, 0
    %p78 = por %p76, %p77
    %p79 = scmp.ne.s32.totalorder %s67, %s68
    %p80 = scmp.eq.s32.totalorder %s16, 1
    %p81 = por %p79, %p80
    %p83 = scmp.ne.s32.totalorder %s68, %s82
    %p84 = scmp.eq.s32.totalorder %s16, 0
    %p85 = por %p83, %p84
    %s87 = sadd.s32 %s86, 1
    %p90 = scmp.eq.s32.totalorder %s10, 1
    %p91 = scmp.ne.s32.totalorder %s86, %s88
    %p92 = scmp.eq.s32.totalorder %s10, 0
    %p93 = por %p91, %p92
    %p94 = scmp.ne.s32.totalorder %s86, %s88
    %p95 = scmp.eq.s32.totalorder %s15, 1
    %p96 = por %p94, %p95
    %p97 = scmp.ne.s32.totalorder %s88, %s89
    %p98 = scmp.eq.s32.totalorder %s15, 0
    %p99 = por %p97, %p98
    %p100 = scmp.ne.s32.totalorder %s88, %s89
    %p101 = scmp.eq.s32.totalorder %s16, 1
    %p102 = por %p100, %p101
    %p104 = scmp.ne.s32.totalorder %s89, %s103
    %p105 = scmp.eq.s32.totalorder %s16, 0
    %p106 = por %p104, %p105
    %s107 = ssub.s32 %s10, %s17
    %p108 = scmp.eq.s32.totalorder %s107, 0
    %s110 = sadd.s32 %s109, 1
    %s111 = scalar_select %p108, %s109, %s110
    %p114 = pneg %p108
    %p115 = scmp.eq.s32.totalorder %s10, 1
    %p116 = por %p114, %p115
    %p117 = scmp.ne.s32.totalorder %s109, %s112
    %p118 = scmp.eq.s32.totalorder %s10, 0
    %p119 = por %p117, %p118
    %p120 = scmp.ne.s32.totalorder %s109, %s112
    %p121 = scmp.eq.s32.totalorder %s15, 1
    %p122 = por %p120, %p121
    %p123 = scmp.ne.s32.totalorder %s112, %s113
    %p124 = scmp.eq.s32.totalorder %s15, 0
    %p125 = por %p123, %p124
    %p126 = scmp.ne.s32.totalorder %s112, %s113
    %p127 = scmp.eq.s32.totalorder %s16, 1
    %p128 = por %p126, %p127
    %p130 = scmp.ne.s32.totalorder %s113, %s129
    %p131 = scmp.eq.s32.totalorder %s16, 0
    %p132 = por %p130, %p131
    %p133 = scmp.le.s32.totalorder 1, %s10
    %p134 = scmp.lt.s32.totalorder %s10, 3
    %p135 = pnand %p133, %p134
    %p136 = pneg %p135
    // Predicated region
    $region9: #{inception_block_light.1} parent=5 // pred_check
      _
    $region10: #{inception_block_light.1} parent=5 // pred_check_branch
      %138 = sbr.rel (%p135) target = $region12
    $region11: #{inception_block_light.1} parent=5 // pred_region
      %s139 = ssub.s32 %s10, 1
      // Predicated region
      $region13: #{inception_block_light.1} parent=11 // pred_check
        %p140 = pneg %p57
      $region14: #{inception_block_light.1} parent=11 // pred_check_branch
        %142 = sbr.rel (%p140) target = $region16
      $region15: #{inception_block_light.1} parent=11 // pred_region
        _
      $region16: #{inception_block_light.1} parent=11 // pred_fallthru
        _
      // Predicated region
      $region17: #{inception_block_light.1} parent=11 // pred_check
        %p143 = pneg %p78
      $region18: #{inception_block_light.1} parent=11 // pred_check_branch
        %145 = sbr.rel (%p143) target = $region20
      $region19: #{inception_block_light.1} parent=11 // pred_region
        _
      $region20: #{inception_block_light.1} parent=11 // pred_fallthru
        _
      // Predicated region
      $region21: #{inception_block_light.1} parent=11 // pred_check
        %p146 = pneg %p99
      $region22: #{inception_block_light.1} parent=11 // pred_check_branch
        %148 = sbr.rel (%p146) target = $region24
      $region23: #{inception_block_light.1} parent=11 // pred_region
        _
      $region24: #{inception_block_light.1} parent=11 // pred_fallthru
        _
    $region12: #{inception_block_light.1} parent=5 // pred_fallthru
      _
    %p149 = scmp.lt.s32.totalorder %s10, 2
    // Predicated region
    $region25: #{inception_block_light.1} parent=5 // pred_check
      %p150 = pneg %p149
    $region26: #{inception_block_light.1} parent=5 // pred_check_branch
      %152 = sbr.rel (%p150) target = $region28
    $region27: #{inception_block_light.1} parent=5 // pred_region
      // Predicated region
      $region29: #{inception_block_light.1} parent=27 // pred_check
        %p153 = pneg %p30
      $region30: #{inception_block_light.1} parent=27 // pred_check_branch
        %155 = sbr.rel (%p153) target = $region32
      $region31: #{inception_block_light.1} parent=27 // pred_region
        %p156 = scmp.lt.s32.totalorder %s10, 1
        %s157 = scalar_select %p156, %s10, 1
        %s158 = smul.addr %s157, 2
        %s159 = smul.addr %s158, 2
        %s160 = scalar_lea.vmem %s0, %s159
      $region32: #{inception_block_light.1} parent=27 // pred_fallthru
        _
    $region28: #{inception_block_light.1} parent=5 // pred_fallthru
      _
    %p161 = scmp.le.s32.totalorder 1, %s10
    %p162 = scmp.lt.s32.totalorder %s10, 3
    %p163 = pnand %p161, %p162
    %p164 = pneg %p163
    // Predicated region
    $region33: #{inception_block_light.1} parent=5 // pred_check
      _
    $region34: #{inception_block_light.1} parent=5 // pred_check_branch
      %166 = sbr.rel (%p163) target = $region36
    $region35: #{inception_block_light.1} parent=5 // pred_region
      %s167 = ssub.s32 %s10, 1
      %p168 = scmp.lt.s32.totalorder %s15, 1
      %s169 = scalar_select %p168, %s15, 1
      %s170 = smul.addr %s169, 2
      %s171 = smul.addr %s170, 2
      %s172 = scalar_lea.vmem %s0, %s171
      %p173 = pneg %p36
      %p174 = pneg %p33
      %p175 = pneg %p57
      %p176 = pneg %p54
      %p177 = pneg %p78
      %p178 = pneg %p75
      %p179 = pneg %p99
      %p180 = pneg %p96
      %p181 = pneg %p125
      %p182 = pneg %p122
      %p183 = scmp.lt.s32.totalorder %s15, 1
      %s184 = scalar_select %p183, %s15, 1
      %s185 = smul.addr %s184, 8
      %s186 = smul.addr %s185, 8
      %s187 = scalar_lea.vmem %s4, %s186
      %p188 = scmp.lt.s32.totalorder %s15, 1
      %s189 = scalar_select %p188, %s15, 1
      %s190 = smul.addr %s189, 2
      %s191 = smul.addr %s190, 2
      %s192 = scalar_lea.vmem %s0, %s191
      %p193 = scmp.lt.s32.totalorder %s15, 1
      %s194 = scalar_select %p193, %s15, 1
      %s195 = smul.addr %s194, 8
      %s196 = smul.addr %s195, 8
      %s197 = scalar_lea.vmem %s4, %s196
      %v199 = vld [vmem:[%s192] sm:$0xf]
      %v200 = vld [vmem:[%s1] sm:$0xf]
      %v201 = vld [vmem:[%s1 + $0x4] sm:$0xf]
      %v202 = vld [vmem:[%s1 + $0x8] sm:$0xf]
      %v206 = vunpack.c.l.b16 %v200
      %v207 = vunpack.c.l.b16 %v201
      %v208 = vunpack.c.l.b16 %v202
      %v209 = vpack.c.b16 %v207, %v206
      %v210 = vpack.c.b16 %v208, %v208
      %v213 = vunpack.c.l.s4 1983009808
      %v214 = vunpack.c.0.s8 %v213
      %v215 = vlaneseq
      %v216 = vshrl.u32 %v215, 7
      %v217 = vsub.s32 %v214, %v216
      %v218 = vrot.slane %v199, %v217
      %v219 = vcombine.high %v218, %v218
      %vm220 = vcmask 31744
      %v222 = vsel %vm220, %v209, 0
      %v225 = vsel %vm220, %v210, 0
      %vm227 = vcmask 1041408
      %v229 = vsel %vm227, %v218, 0
      %v232 = vsel %vm227, %v219, 0
      %234 = vmatprep.subr.bf16.mxu0 %v232
      %235 = vmatpush1.bf16.msra.mxu0 %v229
      %236 = vmatprep.subr.bf16.mxu0 0
      %237 = vmatpush1.bf16.msra.mxu0 0
      %238 = vmatprep.subr.bf16.mxu0 0
      %239 = vmatpush1.bf16.msra.mxu0 0
      %240 = vmatprep.subr.bf16.mxu0 0
      %241 = vmatpush1.bf16.msra.mxu0 0
      %242 = vmatprep.subr.bf16.mxu0 0
      %243 = vmatpush1.bf16.msra.mxu0 0
      %244 = vmatprep.subr.bf16.mxu0 0
      %245 = vmatpush1.bf16.msra.mxu0 0
      %246 = vmatprep.subr.bf16.mxu0 0
      %247 = vmatpush1.bf16.msra.mxu0 0
      %248 = vmatprep.subr.bf16.mxu0 0
      %249 = vmatpush1.bf16.msra.mxu0 0
      %250 = vmatprep.subr.bf16.mxu0 0
      %251 = vmatpush1.bf16.msra.mxu0 0
      %252 = vmatprep.subr.bf16.mxu0 0
      %253 = vmatpush1.bf16.msra.mxu0 0
      %254 = vmatprep.subr.bf16.mxu0 0
      %255 = vmatpush1.bf16.msra.mxu0 0
      %256 = vmatprep.subr.bf16.mxu0 0
      %257 = vmatpush1.bf16.msra.mxu0 0
      %258 = vmatprep.subr.bf16.mxu0 0
      %259 = vmatpush1.bf16.msra.mxu0 0
      %260 = vmatprep.subr.bf16.mxu0 0
      %261 = vmatpush1.bf16.msra.mxu0 0
      %262 = vmatprep.subr.bf16.mxu0 0
      %263 = vmatpush1.bf16.msra.mxu0 0
      %264 = vmatprep.subr.bf16.mxu0 0
      %265 = vmatpush1.bf16.msra.mxu0 0
      %266 = vmatprep.mubr.bf16.mxu0 0
      %267 = vmatmul.mubr.bf16.gmra.mrb[0].mxu0 %v222
      %v268 = vpop.f32.mrb[0].mxu0
      %v269 = vadd.f32 0.0, %v268
      %v270 = vpop.f32.mrb[0].mxu0
      %v271 = vadd.f32 0.0, %v270
      %v272 = vpop.f32.mrb[0].mxu0
      %v273 = vadd.f32 0.0, %v272
      %v274 = vpop.f32.mrb[0].mxu0
      %v275 = vadd.f32 0.0, %v274
      %276 = vmatprep.mubr.bf16.mxu0 0
      %277 = vmatmul.mubr.bf16.gmra.mrb[0].mxu0 %v225
      %v278 = vpop.f32.mrb[0].mxu0
      %v279 = vadd.f32 0.0, %v278
      %v280 = vpop.f32.mrb[0].mxu0
      %v281 = vadd.f32 0.0, %v280
      %v282 = vpop.f32.mrb[0].mxu0
      %v283 = vpop.f32.mrb[0].mxu0
      %284 = vdwg.mxu0
      %v285 = vmax.f32 %v269, 0.0
      %v286 = vmax.f32 %v271, 0.0
      %v287 = vmax.f32 %v273, 0.0
      %v288 = vmax.f32 %v275, 0.0
      %v289 = vmax.f32 %v279, 0.0
      %v290 = vmax.f32 %v281, 0.0
      %291 = vst [vmem:[%s197] sm:$0xff] %v285
      %292 = vst [vmem:[%s197 + $0x8] sm:$0xff] %v286
      %293 = vst [vmem:[#allocation2] sm:$0xff] 0.0
      %294 = vst [vmem:[#allocation2 + $0x8] sm:$0xff] 0.0
      %vm295 = vcmask 556032
      %296 = vst.msk [vmem:[#allocation2 + $0x10] sm:$0xff] %vm295, 0.0
      %298 = vrot.lane.b32.xlu0 %v287, 19
      %v299 = vpop.permute.xlu0 %298
      %vm301 = vcmask 285848
      %302 = vst.msk [vmem:[#allocation2] sm:$0xff] %vm301, %v299
      %303 = vrot.lane.b32.xlu0 %v287, 21
      %v304 = vpop.permute.xlu0 %303
      %vm306 = vcmask 433448
      %307 = vst.msk [vmem:[#allocation2] sm:$0xff] %vm306, %v304
      %308 = vrot.lane.b32.xlu0 %v287, 23
      %v309 = vpop.permute.xlu0 %308
      %vm311 = vcmask 581048
      %312 = vst.msk [vmem:[#allocation2] sm:$0xff] %vm311, %v309
      %313 = vrot.lane.b32.xlu0 %v287, 25
      %v314 = vpop.permute.xlu0 %313
      %vm316 = vcmask 728648
      %317 = vst.msk [vmem:[#allocation2] sm:$0xff] %vm316, %v314
      %318 = vrot.lane.b32.xlu0 %v287, 27
      %v319 = vpop.permute.xlu0 %318
      %vm321 = vcmask 876248
      %322 = vst.msk [vmem:[#allocation2] sm:$0xff] %vm321, %v319
      %323 = vrot.lane.b32.xlu0 %v287, 29
      %v324 = vpop.permute.xlu0 %323
      %vm326 = vcmask 1023848
      %327 = vst.msk [vmem:[#allocation2] sm:$0xff] %vm326, %v324
      %328 = vrot.lane.b32.xlu0 %v287, 31
      %v329 = vpop.permute.xlu0 %328
      %vm331 = vcmask 1048568
      %332 = vst.msk [vmem:[#allocation2] sm:$0xff] %vm331, %v329
      %vm333 = vcmask 121856
      %334 = vst.msk [vmem:[#allocation2 + $0x8] sm:$0xff] %vm333, %v329
      %335 = vrot.lane.b32.xlu0 %v287, 33
      %v336 = vpop.permute.xlu0 %335
      %vm338 = vcmask 269448
      %339 = vst.msk [vmem:[#allocation2 + $0x8] sm:$0xff] %vm338, %v336
      %341 = vrot.lane.b32.xlu0 %v288, 35
      %v342 = vpop.permute.xlu0 %341
      %vm344 = vcmask 417048
      %345 = vst.msk [vmem:[#allocation2 + $0x8] sm:$0xff] %vm344, %v342
      %346 = vrot.lane.b32.xlu0 %v288, 37
      %v347 = vpop.permute.xlu0 %346
      %vm349 = vcmask 564648
      %350 = vst.msk [vmem:[#allocation2 + $0x8] sm:$0xff] %vm349, %v347
      %351 = vrot.lane.b32.xlu0 %v288, 39
      %v352 = vpop.permute.xlu0 %351
      %vm354 = vcmask 712248
      %355 = vst.msk [vmem:[#allocation2 + $0x8] sm:$0xff] %vm354, %v352
      %356 = vrot.lane.b32.xlu0 %v288, 41
      %v357 = vpop.permute.xlu0 %356
      %vm359 = vcmask 859848
      %360 = vst.msk [vmem:[#allocation2 + $0x8] sm:$0xff] %vm359, %v357
      %361 = vrot.lane.b32.xlu0 %v288, 43
      %v362 = vpop.permute.xlu0 %361
      %vm364 = vcmask 1007448
      %365 = vst.msk [vmem:[#allocation2 + $0x8] sm:$0xff] %vm364, %v362
      %366 = vrot.lane.b32.xlu0 %v288, 45
      %v367 = vpop.permute.xlu0 %366
      %vm369 = vcmask 1048552
      %370 = vst.msk [vmem:[#allocation2 + $0x8] sm:$0xff] %vm369, %v367
      %vm371 = vcmask 105472
      %372 = vst.msk [vmem:[#allocation2 + $0x10] sm:$0xff] %vm371, %v367
      %373 = vrot.lane.b32.xlu0 %v288, 47
      %v374 = vpop.permute.xlu0 %373
      %vm376 = vcmask 253048
      %377 = vst.msk [vmem:[#allocation2 + $0x10] sm:$0xff] %vm376, %v374
      %378 = vrot.lane.b32.xlu0 %v288, 49
      %v379 = vpop.permute.xlu0 %378
      %vm381 = vcmask 400648
      %382 = vst.msk [vmem:[#allocation2 + $0x10] sm:$0xff] %vm381, %v379
      %v383 = vld [vmem:[#allocation2] sm:$0xff]
      %v384 = vld [vmem:[#allocation2 + $0x8] sm:$0xff]
      %v385 = vld [vmem:[#allocation2 + $0x10] sm:$0xff]
      %v386 = vpack.c.bf16 %v383, %v383
      %v387 = vpack.c.bf16 %v384, %v384
      %v388 = vpack.c.bf16 %v385, %v385
      %v392 = vunpack.c.l.b16 %v386
      %v393 = vunpack.c.l.b16 %v387
      %v394 = vunpack.c.l.b16 %v388
      %v395 = vpack.c.b16 %v393, %v392
      %v396 = vpack.c.b16 %v394, %v394
      %399 = vst [vmem:[#allocation4] sm:$0xff] %v395
      %vm400 = vcmask 240640
      %401 = vst.msk [vmem:[#allocation4 + $0x8] sm:$0xf] %vm400, %v396
      %402 = vrot.lane.b32.xlu0 %v395, 127
      %v403 = vpop.permute.xlu0 %402
      %404 = vrot.lane.b32.xlu0 %v396, 127
      %v405 = vpop.permute.xlu0 %404
      %v406 = vrot.slane %v403, 4
      %v407 = vrot.slane %v405, 4
      %vm408 = vcmask 1043456
      %v409 = vsel %vm408, %v406, %v407
      %vm410 = vcmask 1039360
      %v411 = vsel %vm410, %v403, %v409
      %414 = vst [vmem:[#allocation4 + $0xc] sm:$0xff] %v411
      %415 = vst.msk [vmem:[#allocation4 + $0x14] sm:$0xf] %vm400, %v405
      %416 = vrot.lane.b32.xlu0 %v395, 126
      %v417 = vpop.permute.xlu0 %416
      %418 = vrot.lane.b32.xlu0 %v396, 126
      %v419 = vpop.permute.xlu0 %418
      %v420 = vrot.slane %v417, 4
      %v421 = vrot.slane %v419, 4
      %v422 = vsel %vm408, %v420, %v421
      %vm423 = vcmask 1031168
      %v424 = vsel %vm423, %v417, %v422
      %427 = vst [vmem:[#allocation4 + $0x18] sm:$0xff] %v424
      %428 = vst.msk [vmem:[#allocation4 + $0x20] sm:$0xf] %vm400, %v419
      %429 = vrot.lane.b32.xlu0 %v395, 110
      %v430 = vpop.permute.xlu0 %429
      %431 = vrot.lane.b32.xlu0 %v396, 110
      %v432 = vpop.permute.xlu0 %431
      %v433 = vrot.slane %v430, 4
      %v434 = vrot.slane %v432, 4
      %v435 = vsel %vm408, %v433, %v434
      %vm436 = vcmask 900096
      %v437 = vsel %vm436, %v430, %v435
      %440 = vst [vmem:[#allocation4 + $0x24] sm:$0xff] %v437
      %441 = vst.msk [vmem:[#allocation4 + $0x2c] sm:$0xf] %vm400, %v432
      %442 = vrot.lane.b32.xlu0 %v395, 109
      %v443 = vpop.permute.xlu0 %442
      %444 = vrot.lane.b32.xlu0 %v396, 109
      %v445 = vpop.permute.xlu0 %444
      %v446 = vrot.slane %v443, 4
      %v447 = vrot.slane %v445, 4
      %v448 = vsel %vm408, %v446, %v447
      %vm449 = vcmask 891904
      %v450 = vsel %vm449, %v443, %v448
      %453 = vst [vmem:[#allocation4 + $0x30] sm:$0xff] %v450
      %454 = vst.msk [vmem:[#allocation4 + $0x38] sm:$0xf] %vm400, %v445
      %455 = vrot.lane.b32.xlu0 %v395, 108
      %v456 = vpop.permute.xlu0 %455
      %457 = vrot.lane.b32.xlu0 %v396, 108
      %v458 = vpop.permute.xlu0 %457
      %v459 = vrot.slane %v456, 4
      %v460 = vrot.slane %v458, 4
      %v461 = vsel %vm408, %v459, %v460
      %vm462 = vcmask 883712
      %v463 = vsel %vm462, %v456, %v461
      %466 = vst [vmem:[#allocation4 + $0x3c] sm:$0xff] %v463
      %467 = vst.msk [vmem:[#allocation4 + $0x44] sm:$0xf] %vm400, %v458
      %468 = vrot.lane.b32.xlu0 %v395, 92
      %v469 = vpop.permute.xlu0 %468
      %470 = vrot.lane.b32.xlu0 %v396, 92
      %v471 = vpop.permute.xlu0 %470
      %v472 = vrot.slane %v469, 4
      %v473 = vrot.slane %v471, 4
      %v474 = vsel %vm408, %v472, %v473
      %vm475 = vcmask 752640
      %v476 = vsel %vm475, %v469, %v474
      %479 = vst [vmem:[#allocation4 + $0x48] sm:$0xff] %v476
      %480 = vst.msk [vmem:[#allocation4 + $0x50] sm:$0xf] %vm400, %v471
      %481 = vrot.lane.b32.xlu0 %v395, 91
      %v482 = vpop.permute.xlu0 %481
      %483 = vrot.lane.b32.xlu0 %v396, 91
      %v484 = vpop.permute.xlu0 %483
      %v485 = vrot.slane %v482, 4
      %v486 = vrot.slane %v484, 4
      %v487 = vsel %vm408, %v485, %v486
      %vm488 = vcmask 744448
      %v489 = vsel %vm488, %v482, %v487
      %492 = vst [vmem:[#allocation4 + $0x54] sm:$0xff] %v489
      %493 = vst.msk [vmem:[#allocation4 + $0x5c] sm:$0xf] %vm400, %v484
      %494 = vrot.lane.b32.xlu0 %v395, 90
      %v495 = vpop.permute.xlu0 %494
      %496 = vrot.lane.b32.xlu0 %v396, 90
      %v497 = vpop.permute.xlu0 %496
      %v498 = vrot.slane %v495, 4
      %v499 = vrot.slane %v497, 4
      %v500 = vsel %vm408, %v498, %v499
      %vm501 = vcmask 736256
      %v502 = vsel %vm501, %v495, %v500
      %505 = vst [vmem:[#allocation4 + $0x60] sm:$0xff] %v502
      %506 = vst.msk [vmem:[#allocation4 + $0x68] sm:$0xf] %vm400, %v497
      %v507 = vld [vmem:[%s2] sm:$0xf]
      %v508 = vld [vmem:[%s2 + $0x4] sm:$0xf]
      %v509 = vld [vmem:[#allocation4] sm:$0xff]
      %v510 = vld [vmem:[#allocation4 + $0x8] sm:$0xf]
      %v511 = vld [vmem:[#allocation4 + $0xc] sm:$0xff]
      %v512 = vld [vmem:[#allocation4 + $0x14] sm:$0xf]
      %v513 = vld [vmem:[#allocation4 + $0x18] sm:$0xff]
      %v514 = vld [vmem:[#allocation4 + $0x20] sm:$0xf]
      %v515 = vld [vmem:[#allocation4 + $0x24] sm:$0xff]
      %v516 = vld [vmem:[#allocation4 + $0x2c] sm:$0xf]
      %v517 = vld [vmem:[#allocation4 + $0x30] sm:$0xff]
      %v518 = vld [vmem:[#allocation4 + $0x38] sm:$0xf]
      %v519 = vld [vmem:[#allocation4 + $0x3c] sm:$0xff]
      %v520 = vld [vmem:[#allocation4 + $0x44] sm:$0xf]
      %v521 = vld [vmem:[#allocation4 + $0x48] sm:$0xff]
      %v522 = vld [vmem:[#allocation4 + $0x50] sm:$0xf]
      %v523 = vld [vmem:[#allocation4 + $0x54] sm:$0xff]
      %v524 = vld [vmem:[#allocation4 + $0x5c] sm:$0xf]
      %v525 = vld [vmem:[#allocation4 + $0x60] sm:$0xff]
      %v526 = vld [vmem:[#allocation4 + $0x68] sm:$0xf]
      %v529 = vunpack.c.l.b16 %v507
      %v530 = vunpack.c.l.b16 %v508
      %v531 = vpack.c.b16 %v530, %v529
      %v550 = vunpack.c.l.b16 %v509
      %v551 = vunpack.c.h.b16 %v509
      %v552 = vunpack.c.l.b16 %v510
      %v553 = vunpack.c.l.b16 %v511
      %v554 = vunpack.c.h.b16 %v511
      %v555 = vunpack.c.l.b16 %v512
      %v556 = vunpack.c.l.b16 %v513
      %v557 = vunpack.c.h.b16 %v513
      %v558 = vunpack.c.l.b16 %v514
      %v559 = vunpack.c.l.b16 %v515
      %v560 = vunpack.c.h.b16 %v515
      %v561 = vunpack.c.l.b16 %v516
      %v562 = vunpack.c.l.b16 %v517
      %v563 = vunpack.c.h.b16 %v517
      %v564 = vunpack.c.l.b16 %v518
      %v565 = vunpack.c.l.b16 %v519
      %v566 = vunpack.c.h.b16 %v519
      %v567 = vunpack.c.l.b16 %v520
      %v568 = vunpack.c.l.b16 %v521
      %v569 = vunpack.c.h.b16 %v521
      %v570 = vunpack.c.l.b16 %v522
      %v571 = vunpack.c.l.b16 %v523
      %v572 = vunpack.c.h.b16 %v523
      %v573 = vunpack.c.l.b16 %v524
      %v574 = vunpack.c.l.b16 %v525
      %v575 = vunpack.c.h.b16 %v525
      %v576 = vunpack.c.l.b16 %v526
      %v577 = vpack.c.b16 %v553, %v550
      %v578 = vpack.c.b16 %v554, %v551
      %v579 = vpack.c.b16 %v555, %v552
      %v580 = vpack.c.b16 %v559, %v556
      %v581 = vpack.c.b16 %v560, %v557
      %v582 = vpack.c.b16 %v561, %v558
      %v583 = vpack.c.b16 %v565, %v562
      %v584 = vpack.c.b16 %v566, %v563
      %v585 = vpack.c.b16 %v567, %v564
      %v586 = vpack.c.b16 %v571, %v568
      %v587 = vpack.c.b16 %v572, %v569
      %v588 = vpack.c.b16 %v573, %v570
      %v589 = vpack.c.b16 %v574, %v574
      %v590 = vpack.c.b16 %v575, %v575
      %v591 = vpack.c.b16 %v576, %v576
      %vm604 = vcmask 588800
      %v606 = vsel %vm604, %v531, 0
      %vm608 = vcmask 1043456
      %v610 = vsel %vm608, %v589, 0
      %v613 = vsel %vm608, %v590, 0
      %v616 = vsel %vm608, %v591, 0
      %618 = vmatprep.subr.bf16.mxu0 %v578
      %619 = vmatpush1.bf16.msra.mxu0 %v577
      %620 = vmatprep.subr.bf16.mxu0 %v581
      %621 = vmatpush1.bf16.msra.mxu0 %v580
      %622 = vmatprep.subr.bf16.mxu0 %v584
      %623 = vmatpush1.bf16.msra.mxu0 %v583
      %624 = vmatprep.subr.bf16.mxu0 %v587
      %625 = vmatpush1.bf16.msra.mxu0 %v586
      %626 = vmatprep.subr.bf16.mxu0 %v613
      %627 = vmatpush1.bf16.msra.mxu0 %v610
      %628 = vmatprep.subr.bf16.mxu0 0
      %629 = vmatpush1.bf16.msra.mxu0 0
      %630 = vmatprep.subr.bf16.mxu0 0
      %631 = vmatpush1.bf16.msra.mxu0 0
      %632 = vmatprep.subr.bf16.mxu0 0
      %633 = vmatpush1.bf16.msra.mxu0 0
      %634 = vmatprep.subr.bf16.mxu0 0
      %635 = vmatpush1.bf16.msra.mxu0 0
      %636 = vmatprep.subr.bf16.mxu0 0
      %637 = vmatpush1.bf16.msra.mxu0 0
      %638 = vmatprep.subr.bf16.mxu0 0
      %639 = vmatpush1.bf16.msra.mxu0 0
      %640 = vmatprep.subr.bf16.mxu0 0
      %641 = vmatpush1.bf16.msra.mxu0 0
      %642 = vmatprep.subr.bf16.mxu0 0
      %643 = vmatpush1.bf16.msra.mxu0 0
      %644 = vmatprep.subr.bf16.mxu0 0
      %645 = vmatpush1.bf16.msra.mxu0 0
      %646 = vmatprep.subr.bf16.mxu0 0
      %647 = vmatpush1.bf16.msra.mxu0 0
      %648 = vmatprep.subr.bf16.mxu0 0
      %649 = vmatpush1.bf16.msra.mxu0 0
      %650 = vmatprep.mubr.bf16.mxu0 0
      %651 = vmatmul.mubr.bf16.gmra.mrb[0].mxu0 %v606
      %v652 = vpop.f32.mrb[0].mxu0
      %v653 = vadd.f32 0.0, %v652
      %v654 = vpop.f32.mrb[0].mxu0
      %v655 = vadd.f32 0.0, %v654
      %v656 = vpop.f32.mrb[0].mxu0
      %v657 = vadd.f32 0.0, %v656
      %v658 = vpop.f32.mrb[0].mxu0
      %v659 = vadd.f32 0.0, %v658
      %660 = vdwg.mxu0
      %661 = vmatprep.subr.bf16.mxu0 0
      %662 = vmatpush1.bf16.msra.mxu0 %v579
      %663 = vmatprep.subr.bf16.mxu0 0
      %664 = vmatpush1.bf16.msra.mxu0 %v582
      %665 = vmatprep.subr.bf16.mxu0 0
      %666 = vmatpush1.bf16.msra.mxu0 %v585
      %667 = vmatprep.subr.bf16.mxu0 0
      %668 = vmatpush1.bf16.msra.mxu0 %v588
      %669 = vmatprep.subr.bf16.mxu0 0
      %670 = vmatpush1.bf16.msra.mxu0 %v616
      %671 = vmatprep.subr.bf16.mxu0 0
      %672 = vmatpush1.bf16.msra.mxu0 0
      %673 = vmatprep.subr.bf16.mxu0 0
      %674 = vmatpush1.bf16.msra.mxu0 0
      %675 = vmatprep.subr.bf16.mxu0 0
      %676 = vmatpush1.bf16.msra.mxu0 0
      %677 = vmatprep.subr.bf16.mxu0 0
      %678 = vmatpush1.bf16.msra.mxu0 0
      %679 = vmatprep.subr.bf16.mxu0 0
      %680 = vmatpush1.bf16.msra.mxu0 0
      %681 = vmatprep.subr.bf16.mxu0 0
      %682 = vmatpush1.bf16.msra.mxu0 0
      %683 = vmatprep.subr.bf16.mxu0 0
      %684 = vmatpush1.bf16.msra.mxu0 0
      %685 = vmatprep.subr.bf16.mxu0 0
      %686 = vmatpush1.bf16.msra.mxu0 0
      %687 = vmatprep.subr.bf16.mxu0 0
      %688 = vmatpush1.bf16.msra.mxu0 0
      %689 = vmatprep.subr.bf16.mxu0 0
      %690 = vmatpush1.bf16.msra.mxu0 0
      %691 = vmatprep.subr.bf16.mxu0 0
      %692 = vmatpush1.bf16.msra.mxu0 0
      %693 = vmatprep.mubr.bf16.mxu0 0
      %694 = vmatmul.mubr.bf16.gmra.mrb[0].mxu0 %v606
      %v695 = vpop.f32.mrb[0].mxu0
      %v696 = vadd.f32 0.0, %v695
      %v697 = vpop.f32.mrb[0].mxu0
      %v698 = vpop.f32.mrb[0].mxu0
      %v699 = vadd.f32 0.0, %v698
      %v700 = vpop.f32.mrb[0].mxu0
      %701 = vdwg.mxu0
      %v702 = vmax.f32 %v653, 0.0
      %v703 = vmax.f32 %v655, 0.0
      %v704 = vmax.f32 %v696, 0.0
      %v705 = vmax.f32 %v657, 0.0
      %v706 = vmax.f32 %v659, 0.0
      %v707 = vmax.f32 %v699, 0.0
      %vm708 = vcmask 130048
      %709 = vst.msk [vmem:[%s197 + $0x10] sm:$0xff] %vm708, %v702
      %710 = vst.msk [vmem:[%s197 + $0x20] sm:$0xff] %vm708, %v705
      %713 = vrot.lane.b32.xlu0 %v702, 126
      %v714 = vpop.permute.xlu0 %713
      %715 = vrot.lane.b32.xlu0 %v705, 126
      %v716 = vpop.permute.xlu0 %715
      %vm719 = vcmask 261248
      %720 = vst.msk [vmem:[%s197 + $0x10] sm:$0xff] %vm719, %v714
      %721 = vst.msk [vmem:[%s197 + $0x20] sm:$0xff] %vm719, %v716
      %722 = vrot.lane.b32.xlu0 %v702, 124
      %v723 = vpop.permute.xlu0 %722
      %724 = vrot.lane.b32.xlu0 %v705, 124
      %v725 = vpop.permute.xlu0 %724
      %vm728 = vcmask 392448
      %729 = vst.msk [vmem:[%s197 + $0x10] sm:$0xff] %vm728, %v723
      %730 = vst.msk [vmem:[%s197 + $0x20] sm:$0xff] %vm728, %v725
      %731 = vrot.lane.b32.xlu0 %v702, 122
      %v732 = vpop.permute.xlu0 %731
      %733 = vrot.lane.b32.xlu0 %v705, 122
      %v734 = vpop.permute.xlu0 %733
      %vm737 = vcmask 523648
      %738 = vst.msk [vmem:[%s197 + $0x10] sm:$0xff] %vm737, %v732
      %739 = vst.msk [vmem:[%s197 + $0x20] sm:$0xff] %vm737, %v734
      %740 = vrot.lane.b32.xlu0 %v702, 120
      %v741 = vpop.permute.xlu0 %740
      %742 = vrot.lane.b32.xlu0 %v705, 120
      %v743 = vpop.permute.xlu0 %742
      %vm746 = vcmask 654848
      %747 = vst.msk [vmem:[%s197 + $0x10] sm:$0xff] %vm746, %v741
      %748 = vst.msk [vmem:[%s197 + $0x20] sm:$0xff] %vm746, %v743
      %749 = vrot.lane.b32.xlu0 %v702, 118
      %v750 = vpop.permute.xlu0 %749
      %751 = vrot.lane.b32.xlu0 %v705, 118
      %v752 = vpop.permute.xlu0 %751
      %vm755 = vcmask 786048
      %756 = vst.msk [vmem:[%s197 + $0x10] sm:$0xff] %vm755, %v750
      %757 = vst.msk [vmem:[%s197 + $0x20] sm:$0xff] %vm755, %v752
      %758 = vrot.lane.b32.xlu0 %v702, 116
      %v759 = vpop.permute.xlu0 %758
      %760 = vrot.lane.b32.xlu0 %v705, 116
      %v761 = vpop.permute.xlu0 %760
      %vm764 = vcmask 917248
      %765 = vst.msk [vmem:[%s197 + $0x10] sm:$0xff] %vm764, %v759
      %766 = vst.msk [vmem:[%s197 + $0x20] sm:$0xff] %vm764, %v761
      %769 = vrot.lane.b32.xlu0 %v702, 114
      %v770 = vpop.permute.xlu0 %769
      %771 = vrot.lane.b32.xlu0 %v703, 114
      %v772 = vpop.permute.xlu0 %771
      %773 = vrot.lane.b32.xlu0 %v705, 114
      %v774 = vpop.permute.xlu0 %773
      %775 = vrot.lane.b32.xlu0 %v706, 114
      %v776 = vpop.permute.xlu0 %775
      %vm777 = vcmask 932864
      %v778 = vsel %vm777, %v770, %v772
      %v779 = vsel %vm777, %v774, %v776
      %vm782 = vcmask 1048448
      %783 = vst.msk [vmem:[%s197 + $0x10] sm:$0xff] %vm782, %v778
      %784 = vst.msk [vmem:[%s197 + $0x20] sm:$0xff] %vm782, %v779
      %785 = vrot.lane.b32.xlu0 %v703, 112
      %v786 = vpop.permute.xlu0 %785
      %787 = vrot.lane.b32.xlu0 %v706, 112
      %v788 = vpop.permute.xlu0 %787
      %791 = vst.msk [vmem:[%s197 + $0x18] sm:$0xff] %vm708, %v786
      %792 = vst.msk [vmem:[%s197 + $0x28] sm:$0xff] %vm708, %v788
      %793 = vrot.lane.b32.xlu0 %v703, 110
      %v794 = vpop.permute.xlu0 %793
      %795 = vrot.lane.b32.xlu0 %v706, 110
      %v796 = vpop.permute.xlu0 %795
      %799 = vst.msk [vmem:[%s197 + $0x18] sm:$0xff] %vm719, %v794
      %800 = vst.msk [vmem:[%s197 + $0x28] sm:$0xff] %vm719, %v796
      %801 = vrot.lane.b32.xlu0 %v703, 108
      %v802 = vpop.permute.xlu0 %801
      %803 = vrot.lane.b32.xlu0 %v706, 108
      %v804 = vpop.permute.xlu0 %803
      %807 = vst.msk [vmem:[%s197 + $0x18] sm:$0xff] %vm728, %v802
      %808 = vst.msk [vmem:[%s197 + $0x28] sm:$0xff] %vm728, %v804
      %809 = vrot.lane.b32.xlu0 %v703, 106
      %v810 = vpop.permute.xlu0 %809
      %811 = vrot.lane.b32.xlu0 %v706, 106
      %v812 = vpop.permute.xlu0 %811
      %815 = vst.msk [vmem:[%s197 + $0x18] sm:$0xff] %vm737, %v810
      %816 = vst.msk [vmem:[%s197 + $0x28] sm:$0xff] %vm737, %v812
      %817 = vrot.lane.b32.xlu0 %v703, 104
      %v818 = vpop.permute.xlu0 %817
      %819 = vrot.lane.b32.xlu0 %v706, 104
      %v820 = vpop.permute.xlu0 %819
      %823 = vst.msk [vmem:[%s197 + $0x18] sm:$0xff] %vm746, %v818
      %824 = vst.msk [vmem:[%s197 + $0x28] sm:$0xff] %vm746, %v820
      %825 = vrot.lane.b32.xlu0 %v703, 102
      %v826 = vpop.permute.xlu0 %825
      %827 = vrot.lane.b32.xlu0 %v706, 102
      %v828 = vpop.permute.xlu0 %827
      %831 = vst.msk [vmem:[%s197 + $0x18] sm:$0xff] %vm755, %v826
      %832 = vst.msk [vmem:[%s197 + $0x28] sm:$0xff] %vm755, %v828
      %835 = vrot.lane.b32.xlu0 %v703, 100
      %v836 = vpop.permute.xlu0 %835
      %837 = vrot.lane.b32.xlu0 %v704, 100
      %v838 = vpop.permute.xlu0 %837
      %839 = vrot.lane.b32.xlu0 %v706, 100
      %v840 = vpop.permute.xlu0 %839
      %841 = vrot.lane.b32.xlu0 %v707, 100
      %v842 = vpop.permute.xlu0 %841
      %vm843 = vcmask 818176
      %v844 = vsel %vm843, %v836, %v838
      %v845 = vsel %vm843, %v840, %v842
      %848 = vst.msk [vmem:[%s197 + $0x18] sm:$0xff] %vm764, %v844
      %849 = vst.msk [vmem:[%s197 + $0x28] sm:$0xff] %vm764, %v845
      %850 = vrot.lane.b32.xlu0 %v704, 98
      %v851 = vpop.permute.xlu0 %850
      %852 = vrot.lane.b32.xlu0 %v707, 98
      %v853 = vpop.permute.xlu0 %852
      %856 = vst.msk [vmem:[%s197 + $0x18] sm:$0xff] %vm782, %v851
      %857 = vst.msk [vmem:[%s197 + $0x28] sm:$0xff] %vm782, %v853
      %858 = vst [vmem:[#allocation3] sm:$0xff] 0.0
      %859 = vst [vmem:[#allocation3 + $0x8] sm:$0xff] 0.0
      %860 = vst [vmem:[#allocation3 + $0x10] sm:$0xff] 0.0
      %861 = vst.msk [vmem:[#allocation3 + $0x18] sm:$0xff] %vm708, 0.0
      %863 = vrot.lane.b32.xlu0 %v289, 42
      %v864 = vpop.permute.xlu0 %863
      %vm866 = vcmask 474448
      %867 = vst.msk [vmem:[#allocation3] sm:$0xff] %vm866, %v864
      %868 = vrot.lane.b32.xlu0 %v289, 46
      %v869 = vpop.permute.xlu0 %868
      %vm871 = vcmask 638448
      %872 = vst.msk [vmem:[#allocation3] sm:$0xff] %vm871, %v869
      %873 = vrot.lane.b32.xlu0 %v289, 50
      %v874 = vpop.permute.xlu0 %873
      %vm876 = vcmask 802448
      %877 = vst.msk [vmem:[#allocation3] sm:$0xff] %vm876, %v874
      %878 = vrot.lane.b32.xlu0 %v289, 54
      %v879 = vpop.permute.xlu0 %878
      %vm881 = vcmask 966448
      %882 = vst.msk [vmem:[#allocation3] sm:$0xff] %vm881, %v879
      %883 = vrot.lane.b32.xlu0 %v289, 58
      %v884 = vpop.permute.xlu0 %883
      %vm886 = vcmask 1048528
      %887 = vst.msk [vmem:[#allocation3] sm:$0xff] %vm886, %v884
      %vm888 = vcmask 80896
      %889 = vst.msk [vmem:[#allocation3 + $0x8] sm:$0xff] %vm888, %v884
      %890 = vrot.lane.b32.xlu0 %v289, 62
      %v891 = vpop.permute.xlu0 %890
      %vm893 = vcmask 244848
      %894 = vst.msk [vmem:[#allocation3 + $0x8] sm:$0xff] %vm893, %v891
      %895 = vrot.lane.b32.xlu0 %v289, 66
      %v896 = vpop.permute.xlu0 %895
      %vm898 = vcmask 408848
      %899 = vst.msk [vmem:[#allocation3 + $0x8] sm:$0xff] %vm898, %v896
      %900 = vrot.lane.b32.xlu0 %v289, 70
      %v901 = vpop.permute.xlu0 %900
      %vm903 = vcmask 572848
      %904 = vst.msk [vmem:[#allocation3 + $0x8] sm:$0xff] %vm903, %v901
      %906 = vrot.lane.b32.xlu0 %v290, 74
      %v907 = vpop.permute.xlu0 %906
      %vm909 = vcmask 736848
      %910 = vst.msk [vmem:[#allocation3 + $0x8] sm:$0xff] %vm909, %v907
      %911 = vrot.lane.b32.xlu0 %v290, 78
      %v912 = vpop.permute.xlu0 %911
      %vm914 = vcmask 900848
      %915 = vst.msk [vmem:[#allocation3 + $0x8] sm:$0xff] %vm914, %v912
      %916 = vrot.lane.b32.xlu0 %v290, 82
      %v917 = vpop.permute.xlu0 %916
      %vm919 = vcmask 1048464
      %920 = vst.msk [vmem:[#allocation3 + $0x8] sm:$0xff] %vm919, %v917
      %vm921 = vcmask 15360
      %922 = vst.msk [vmem:[#allocation3 + $0x10] sm:$0xff] %vm921, %v917
      %923 = vrot.lane.b32.xlu0 %v290, 86
      %v924 = vpop.permute.xlu0 %923
      %vm926 = vcmask 179248
      %927 = vst.msk [vmem:[#allocation3 + $0x10] sm:$0xff] %vm926, %v924
      %928 = vrot.lane.b32.xlu0 %v290, 90
      %v929 = vpop.permute.xlu0 %928
      %vm931 = vcmask 343248
      %932 = vst.msk [vmem:[#allocation3 + $0x10] sm:$0xff] %vm931, %v929
      %933 = vrot.lane.b32.xlu0 %v290, 94
      %v934 = vpop.permute.xlu0 %933
      %vm936 = vcmask 507248
      %937 = vst.msk [vmem:[#allocation3 + $0x10] sm:$0xff] %vm936, %v934
      %938 = vrot.lane.b32.xlu0 %v290, 98
      %v939 = vpop.permute.xlu0 %938
      %vm941 = vcmask 671248
      %942 = vst.msk [vmem:[#allocation3 + $0x10] sm:$0xff] %vm941, %v939
      %943 = vrot.lane.b32.xlu0 %v290, 102
      %v944 = vpop.permute.xlu0 %943
      %vm946 = vcmask 835248
      %947 = vst.msk [vmem:[#allocation3 + $0x10] sm:$0xff] %vm946, %v944
      %v948 = vld [vmem:[#allocation3] sm:$0xff]
      %v949 = vld [vmem:[#allocation3 + $0x8] sm:$0xff]
      %v950 = vld [vmem:[#allocation3 + $0x10] sm:$0xff]
      %v951 = vld [vmem:[#allocation3 + $0x18] sm:$0xff]
      %v952 = vpack.c.bf16 %v948, %v948
      %v953 = vpack.c.bf16 %v949, %v949
      %v954 = vpack.c.bf16 %v950, %v950
      %v958 = vunpack.c.l.b16 %v952
      %v959 = vunpack.c.l.b16 %v953
      %v960 = vunpack.c.l.b16 %v954
      %v961 = vpack.c.b16 %v959, %v958
      %v962 = vpack.c.b16 %v960, %v960
      %965 = vst [vmem:[#allocation5] sm:$0xff] %v961
      %vm966 = vcmask 486400
      %967 = vst.msk [vmem:[#allocation5 + $0x8] sm:$0xf] %vm966, %v962
      %968 = vrot.lane.b32.xlu0 %v961, 127
      %v969 = vpop.permute.xlu0 %968
      %970 = vrot.lane.b32.xlu0 %v962, 127
      %v971 = vpop.permute.xlu0 %970
      %v972 = vrot.slane %v969, 4
      %v973 = vrot.slane %v971, 4
      %v974 = vsel %vm408, %v972, %v973
      %v975 = vsel %vm410, %v969, %v974
      %978 = vst [vmem:[#allocation5 + $0xc] sm:$0xff] %v975
      %979 = vst.msk [vmem:[#allocation5 + $0x14] sm:$0xf] %vm966, %v971
      %980 = vrot.lane.b32.xlu0 %v961, 126
      %v981 = vpop.permute.xlu0 %980
      %982 = vrot.lane.b32.xlu0 %v962, 126
      %v983 = vpop.permute.xlu0 %982
      %v984 = vrot.slane %v981, 4
      %v985 = vrot.slane %v983, 4
      %v986 = vsel %vm408, %v984, %v985
      %v987 = vsel %vm423, %v981, %v986
      %990 = vst [vmem:[#allocation5 + $0x18] sm:$0xff] %v987
      %991 = vst.msk [vmem:[#allocation5 + $0x20] sm:$0xf] %vm966, %v983
      %992 = vrot.lane.b32.xlu0 %v961, 125
      %v993 = vpop.permute.xlu0 %992
      %994 = vrot.lane.b32.xlu0 %v962, 125
      %v995 = vpop.permute.xlu0 %994
      %v996 = vrot.slane %v993, 4
      %v997 = vrot.slane %v995, 4
      %v998 = vsel %vm408, %v996, %v997
      %vm999 = vcmask 1022976
      %v1000 = vsel %vm999, %v993, %v998
      %1003 = vst [vmem:[#allocation5 + $0x24] sm:$0xff] %v1000
      %1004 = vst.msk [vmem:[#allocation5 + $0x2c] sm:$0xf] %vm966, %v995
      %1005 = vrot.lane.b32.xlu0 %v961, 124
      %v1006 = vpop.permute.xlu0 %1005
      %1007 = vrot.lane.b32.xlu0 %v962, 124
      %v1008 = vpop.permute.xlu0 %1007
      %v1009 = vrot.slane %v1006, 4
      %v1010 = vrot.slane %v1008, 4
      %v1011 = vsel %vm408, %v1009, %v1010
      %vm1012 = vcmask 1014784
      %v1013 = vsel %vm1012, %v1006, %v1011
      %1016 = vst [vmem:[#allocation5 + $0x30] sm:$0xff] %v1013
      %1017 = vst.msk [vmem:[#allocation5 + $0x38] sm:$0xf] %vm966, %v1008
      %1018 = vrot.lane.b32.xlu0 %v961, 108
      %v1019 = vpop.permute.xlu0 %1018
      %1020 = vrot.lane.b32.xlu0 %v962, 108
      %v1021 = vpop.permute.xlu0 %1020
      %v1022 = vrot.slane %v1019, 4
      %v1023 = vrot.slane %v1021, 4
      %v1024 = vsel %vm408, %v1022, %v1023
      %v1025 = vsel %vm462, %v1019, %v1024
      %1028 = vst [vmem:[#allocation5 + $0x3c] sm:$0xff] %v1025
      %1029 = vst.msk [vmem:[#allocation5 + $0x44] sm:$0xf] %vm966, %v1021
      %1030 = vrot.lane.b32.xlu0 %v961, 107
      %v1031 = vpop.permute.xlu0 %1030
      %1032 = vrot.lane.b32.xlu0 %v962, 107
      %v1033 = vpop.permute.xlu0 %1032
      %v1034 = vrot.slane %v1031, 4
      %v1035 = vrot.slane %v1033, 4
      %v1036 = vsel %vm408, %v1034, %v1035
      %vm1037 = vcmask 875520
      %v1038 = vsel %vm1037, %v1031, %v1036
      %1041 = vst [vmem:[#allocation5 + $0x48] sm:$0xff] %v1038
      %1042 = vst.msk [vmem:[#allocation5 + $0x50] sm:$0xf] %vm966, %v1033
      %1043 = vrot.lane.b32.xlu0 %v961, 106
      %v1044 = vpop.permute.xlu0 %1043
      %1045 = vrot.lane.b32.xlu0 %v962, 106
      %v1046 = vpop.permute.xlu0 %1045
      %v1047 = vrot.slane %v1044, 4
      %v1048 = vrot.slane %v1046, 4
      %v1049 = vsel %vm408, %v1047, %v1048
      %vm1050 = vcmask 867328
      %v1051 = vsel %vm1050, %v1044, %v1049
      %1054 = vst [vmem:[#allocation5 + $0x54] sm:$0xff] %v1051
      %1055 = vst.msk [vmem:[#allocation5 + $0x5c] sm:$0xf] %vm966, %v1046
      %1056 = vrot.lane.b32.xlu0 %v961, 105
      %v1057 = vpop.permute.xlu0 %1056
      %1058 = vrot.lane.b32.xlu0 %v962, 105
      %v1059 = vpop.permute.xlu0 %1058
      %v1060 = vrot.slane %v1057, 4
      %v1061 = vrot.slane %v1059, 4
      %v1062 = vsel %vm408, %v1060, %v1061
      %vm1063 = vcmask 859136
      %v1064 = vsel %vm1063, %v1057, %v1062
      %1067 = vst [vmem:[#allocation5 + $0x60] sm:$0xff] %v1064
      %1068 = vst.msk [vmem:[#allocation5 + $0x68] sm:$0xf] %vm966, %v1059
      %1069 = vrot.lane.b32.xlu0 %v961, 104
      %v1070 = vpop.permute.xlu0 %1069
      %1071 = vrot.lane.b32.xlu0 %v962, 104
      %v1072 = vpop.permute.xlu0 %1071
      %v1073 = vrot.slane %v1070, 4
      %v1074 = vrot.slane %v1072, 4
      %v1075 = vsel %vm408, %v1073, %v1074
      %vm1076 = vcmask 850944
      %v1077 = vsel %vm1076, %v1070, %v1075
      %1080 = vst [vmem:[#allocation5 + $0x6c] sm:$0xff] %v1077
      %1081 = vst.msk [vmem:[#allocation5 + $0x74] sm:$0xf] %vm966, %v1072
      %1082 = vrot.lane.b32.xlu0 %v961, 88
      %v1083 = vpop.permute.xlu0 %1082
      %1084 = vrot.lane.b32.xlu0 %v962, 88
      %v1085 = vpop.permute.xlu0 %1084
      %v1086 = vrot.slane %v1083, 4
      %v1087 = vrot.slane %v1085, 4
      %v1088 = vsel %vm408, %v1086, %v1087
      %vm1089 = vcmask 719872
      %v1090 = vsel %vm1089, %v1083, %v1088
      %1093 = vst [vmem:[#allocation5 + $0x78] sm:$0xff] %v1090
      %1094 = vst.msk [vmem:[#allocation5 + $0x80] sm:$0xf] %vm966, %v1085
      %1095 = vrot.lane.b32.xlu0 %v961, 87
      %v1096 = vpop.permute.xlu0 %1095
      %1097 = vrot.lane.b32.xlu0 %v962, 87
      %v1098 = vpop.permute.xlu0 %1097
      %v1099 = vrot.slane %v1096, 4
      %v1100 = vrot.slane %v1098, 4
      %v1101 = vsel %vm408, %v1099, %v1100
      %vm1102 = vcmask 711680
      %v1103 = vsel %vm1102, %v1096, %v1101
      %1106 = vst [vmem:[#allocation5 + $0x84] sm:$0xff] %v1103
      %1107 = vst.msk [vmem:[#allocation5 + $0x8c] sm:$0xf] %vm966, %v1098
      %1108 = vrot.lane.b32.xlu0 %v961, 86
      %v1109 = vpop.permute.xlu0 %1108
      %1110 = vrot.lane.b32.xlu0 %v962, 86
      %v1111 = vpop.permute.xlu0 %1110
      %v1112 = vrot.slane %v1109, 4
      %v1113 = vrot.slane %v1111, 4
      %v1114 = vsel %vm408, %v1112, %v1113
      %vm1115 = vcmask 703488
      %v1116 = vsel %vm1115, %v1109, %v1114
      %1119 = vst [vmem:[#allocation5 + $0x90] sm:$0xff] %v1116
      %1120 = vst.msk [vmem:[#allocation5 + $0x98] sm:$0xf] %vm966, %v1111
      %1121 = vrot.lane.b32.xlu0 %v961, 85
      %v1122 = vpop.permute.xlu0 %1121
      %1123 = vrot.lane.b32.xlu0 %v962, 85
      %v1124 = vpop.permute.xlu0 %1123
      %v1125 = vrot.slane %v1122, 4
      %v1126 = vrot.slane %v1124, 4
      %v1127 = vsel %vm408, %v1125, %v1126
      %vm1128 = vcmask 695296
      %v1129 = vsel %vm1128, %v1122, %v1127
      %1132 = vst [vmem:[#allocation5 + $0x9c] sm:$0xff] %v1129
      %1133 = vst.msk [vmem:[#allocation5 + $0xa4] sm:$0xf] %vm966, %v1124
      %1134 = vrot.lane.b32.xlu0 %v961, 84
      %v1135 = vpop.permute.xlu0 %1134
      %1136 = vrot.lane.b32.xlu0 %v962, 84
      %v1137 = vpop.permute.xlu0 %1136
      %v1138 = vrot.slane %v1135, 4
      %v1139 = vrot.slane %v1137, 4
      %v1140 = vsel %vm408, %v1138, %v1139
      %vm1141 = vcmask 687104
      %v1142 = vsel %vm1141, %v1135, %v1140
      %1145 = vst [vmem:[#allocation5 + $0xa8] sm:$0xff] %v1142
      %1146 = vst.msk [vmem:[#allocation5 + $0xb0] sm:$0xf] %vm966, %v1137
      %1147 = vrot.lane.b32.xlu0 %v961, 68
      %v1148 = vpop.permute.xlu0 %1147
      %1149 = vrot.lane.b32.xlu0 %v962, 68
      %v1150 = vpop.permute.xlu0 %1149
      %v1151 = vrot.slane %v1148, 4
      %v1152 = vrot.slane %v1150, 4
      %v1153 = vsel %vm408, %v1151, %v1152
      %vm1154 = vcmask 556032
      %v1155 = vsel %vm1154, %v1148, %v1153
      %1158 = vst [vmem:[#allocation5 + $0xb4] sm:$0xff] %v1155
      %1159 = vst.msk [vmem:[#allocation5 + $0xbc] sm:$0xf] %vm966, %v1150
      %1160 = vrot.lane.b32.xlu0 %v961, 67
      %v1161 = vpop.permute.xlu0 %1160
      %1162 = vrot.lane.b32.xlu0 %v962, 67
      %v1163 = vpop.permute.xlu0 %1162
      %v1164 = vrot.slane %v1161, 4
      %v1165 = vrot.slane %v1163, 4
      %v1166 = vsel %vm408, %v1164, %v1165
      %vm1167 = vcmask 547840
      %v1168 = vsel %vm1167, %v1161, %v1166
      %1171 = vst [vmem:[#allocation5 + $0xc0] sm:$0xff] %v1168
      %1172 = vst.msk [vmem:[#allocation5 + $0xc8] sm:$0xf] %vm966, %v1163
      %1173 = vrot.lane.b32.xlu0 %v961, 66
      %v1174 = vpop.permute.xlu0 %1173
      %1175 = vrot.lane.b32.xlu0 %v962, 66
      %v1176 = vpop.permute.xlu0 %1175
      %v1177 = vrot.slane %v1174, 4
      %v1178 = vrot.slane %v1176, 4
      %v1179 = vsel %vm408, %v1177, %v1178
      %vm1180 = vcmask 539648
      %v1181 = vsel %vm1180, %v1174, %v1179
      %1184 = vst [vmem:[#allocation5 + $0xcc] sm:$0xff] %v1181
      %1185 = vst.msk [vmem:[#allocation5 + $0xd4] sm:$0xf] %vm966, %v1176
      %1186 = vrot.lane.b32.xlu0 %v961, 65
      %v1187 = vpop.permute.xlu0 %1186
      %1188 = vrot.lane.b32.xlu0 %v962, 65
      %v1189 = vpop.permute.xlu0 %1188
      %v1190 = vrot.slane %v1187, 4
      %v1191 = vrot.slane %v1189, 4
      %v1192 = vsel %vm408, %v1190, %v1191
      %vm1193 = vcmask 531456
      %v1194 = vsel %vm1193, %v1187, %v1192
      %1197 = vst [vmem:[#allocation5 + $0xd8] sm:$0xff] %v1194
      %1198 = vst.msk [vmem:[#allocation5 + $0xe0] sm:$0xf] %vm966, %v1189
      %1199 = vrot.lane.b32.xlu0 %v961, 64
      %v1200 = vpop.permute.xlu0 %1199
      %1201 = vrot.lane.b32.xlu0 %v962, 64
      %v1202 = vpop.permute.xlu0 %1201
      %v1203 = vrot.slane %v1200, 4
      %v1204 = vrot.slane %v1202, 4
      %v1205 = vsel %vm408, %v1203, %v1204
      %vm1206 = vcmask 523264
      %v1207 = vsel %vm1206, %v1200, %v1205
      %1210 = vst [vmem:[#allocation5 + $0xe4] sm:$0xff] %v1207
      %1211 = vst.msk [vmem:[#allocation5 + $0xec] sm:$0xf] %vm966, %v1202
      %v1212 = vpack.c.bf16 %v951, %v951
      %v1214 = vunpack.c.l.b16 %v1212
      %v1215 = vpack.c.b16 %v1214, %v960
      %1216 = vrot.lane.b32.xlu0 %v961, 48
      %v1217 = vpop.permute.xlu0 %1216
      %1218 = vrot.lane.b32.xlu0 %v1215, 48
      %v1219 = vpop.permute.xlu0 %1218
      %v1220 = vrot.slane %v1217, 4
      %v1221 = vrot.slane %v1219, 4
      %v1222 = vsel %vm408, %v1220, %v1221
      %vm1223 = vcmask 392192
      %v1224 = vsel %vm1223, %v1217, %v1222
      %v1225 = vsel %vm1223, %v1219, %v1221
      %1228 = vst [vmem:[#allocation5 + $0xf0] sm:$0xff] %v1224
      %1229 = vst.msk [vmem:[#allocation5 + $0xf8] sm:$0xf] %vm966, %v1225
      %1230 = vrot.lane.b32.xlu0 %v961, 47
      %v1231 = vpop.permute.xlu0 %1230
      %1232 = vrot.lane.b32.xlu0 %v1215, 47
      %v1233 = vpop.permute.xlu0 %1232
      %v1234 = vrot.slane %v1231, 4
      %v1235 = vrot.slane %v1233, 4
      %v1236 = vsel %vm408, %v1234, %v1235
      %vm1237 = vcmask 384000
      %v1238 = vsel %vm1237, %v1231, %v1236
      %v1239 = vsel %vm1237, %v1233, %v1235
      %1242 = vst [vmem:[#allocation5 + $0xfc] sm:$0xff] %v1238
      %1243 = vst.msk [vmem:[#allocation5 + $0x104] sm:$0xf] %vm966, %v1239
      %1244 = vrot.lane.b32.xlu0 %v961, 46
      %v1245 = vpop.permute.xlu0 %1244
      %1246 = vrot.lane.b32.xlu0 %v1215, 46
      %v1247 = vpop.permute.xlu0 %1246
      %v1248 = vrot.slane %v1245, 4
      %v1249 = vrot.slane %v1247, 4
      %v1250 = vsel %vm408, %v1248, %v1249
      %vm1251 = vcmask 375808
      %v1252 = vsel %vm1251, %v1245, %v1250
      %v1253 = vsel %vm1251, %v1247, %v1249
      %1256 = vst [vmem:[#allocation5 + $0x108] sm:$0xff] %v1252
      %1257 = vst.msk [vmem:[#allocation5 + $0x110] sm:$0xf] %vm966, %v1253
      %1258 = vrot.lane.b32.xlu0 %v961, 45
      %v1259 = vpop.permute.xlu0 %1258
      %1260 = vrot.lane.b32.xlu0 %v1215, 45
      %v1261 = vpop.permute.xlu0 %1260
      %v1262 = vrot.slane %v1259, 4
      %v1263 = vrot.slane %v1261, 4
      %v1264 = vsel %vm408, %v1262, %v1263
      %vm1265 = vcmask 367616
      %v1266 = vsel %vm1265, %v1259, %v1264
      %v1267 = vsel %vm1265, %v1261, %v1263
      %1270 = vst [vmem:[#allocation5 + $0x114] sm:$0xff] %v1266
      %1271 = vst.msk [vmem:[#allocation5 + $0x11c] sm:$0xf] %vm966, %v1267
      %1272 = vrot.lane.b32.xlu0 %v961, 44
      %v1273 = vpop.permute.xlu0 %1272
      %1274 = vrot.lane.b32.xlu0 %v1215, 44
      %v1275 = vpop.permute.xlu0 %1274
      %v1276 = vrot.slane %v1273, 4
      %v1277 = vrot.slane %v1275, 4
      %v1278 = vsel %vm408, %v1276, %v1277
      %vm1279 = vcmask 359424
      %v1280 = vsel %vm1279, %v1273, %v1278
      %v1281 = vsel %vm1279, %v1275, %v1277
      %1284 = vst [vmem:[#allocation5 + $0x120] sm:$0xff] %v1280
      %1285 = vst.msk [vmem:[#allocation5 + $0x128] sm:$0xf] %vm966, %v1281
      %v1286 = vld [vmem:[%s3] sm:$0xff]
      %v1287 = vld [vmem:[#allocation5] sm:$0xff]
      %v1288 = vld [vmem:[#allocation5 + $0x8] sm:$0xf]
      %v1289 = vld [vmem:[#allocation5 + $0xc] sm:$0xff]
      %v1290 = vld [vmem:[#allocation5 + $0x14] sm:$0xf]
      %v1291 = vld [vmem:[#allocation5 + $0x18] sm:$0xff]
      %v1292 = vld [vmem:[#allocation5 + $0x20] sm:$0xf]
      %v1293 = vld [vmem:[#allocation5 + $0x24] sm:$0xff]
      %v1294 = vld [vmem:[#allocation5 + $0x2c] sm:$0xf]
      %v1295 = vld [vmem:[#allocation5 + $0x30] sm:$0xff]
      %v1296 = vld [vmem:[#allocation5 + $0x38] sm:$0xf]
      %v1297 = vld [vmem:[#allocation5 + $0x3c] sm:$0xff]
      %v1298 = vld [vmem:[#allocation5 + $0x44] sm:$0xf]
      %v1299 = vld [vmem:[#allocation5 + $0x48] sm:$0xff]
      %v1300 = vld [vmem:[#allocation5 + $0x50] sm:$0xf]
      %v1301 = vld [vmem:[#allocation5 + $0x54] sm:$0xff]
      %v1302 = vld [vmem:[#allocation5 + $0x5c] sm:$0xf]
      %v1303 = vld [vmem:[#allocation5 + $0x60] sm:$0xff]
      %v1304 = vld [vmem:[#allocation5 + $0x68] sm:$0xf]
      %v1305 = vld [vmem:[#allocation5 + $0x6c] sm:$0xff]
      %v1306 = vld [vmem:[#allocation5 + $0x74] sm:$0xf]
      %v1307 = vld [vmem:[#allocation5 + $0x78] sm:$0xff]
      %v1308 = vld [vmem:[#allocation5 + $0x80] sm:$0xf]
      %v1309 = vld [vmem:[#allocation5 + $0x84] sm:$0xff]
      %v1310 = vld [vmem:[#allocation5 + $0x8c] sm:$0xf]
      %v1311 = vld [vmem:[#allocation5 + $0x90] sm:$0xff]
      %v1312 = vld [vmem:[#allocation5 + $0x98] sm:$0xf]
      %v1313 = vld [vmem:[#allocation5 + $0x9c] sm:$0xff]
      %v1314 = vld [vmem:[#allocation5 + $0xa4] sm:$0xf]
      %v1315 = vld [vmem:[#allocation5 + $0xa8] sm:$0xff]
      %v1316 = vld [vmem:[#allocation5 + $0xb0] sm:$0xf]
      %v1317 = vld [vmem:[#allocation5 + $0xb4] sm:$0xff]
      %v1318 = vld [vmem:[#allocation5 + $0xbc] sm:$0xf]
      %v1319 = vld [vmem:[#allocation5 + $0xc0] sm:$0xff]
      %v1320 = vld [vmem:[#allocation5 + $0xc8] sm:$0xf]
      %v1321 = vld [vmem:[#allocation5 + $0xcc] sm:$0xff]
      %v1322 = vld [vmem:[#allocation5 + $0xd4] sm:$0xf]
      %v1323 = vld [vmem:[#allocation5 + $0xd8] sm:$0xff]
      %v1324 = vld [vmem:[#allocation5 + $0xe0] sm:$0xf]
      %v1325 = vld [vmem:[#allocation5 + $0xe4] sm:$0xff]
      %v1326 = vld [vmem:[#allocation5 + $0xec] sm:$0xf]
      %v1327 = vld [vmem:[#allocation5 + $0xf0] sm:$0xff]
      %v1328 = vld [vmem:[#allocation5 + $0xf8] sm:$0xf]
      %v1329 = vld [vmem:[#allocation5 + $0xfc] sm:$0xff]
      %v1330 = vld [vmem:[#allocation5 + $0x104] sm:$0xf]
      %v1331 = vld [vmem:[#allocation5 + $0x108] sm:$0xff]
      %v1332 = vld [vmem:[#allocation5 + $0x110] sm:$0xf]
      %v1333 = vld [vmem:[#allocation5 + $0x114] sm:$0xff]
      %v1334 = vld [vmem:[#allocation5 + $0x11c] sm:$0xf]
      %v1335 = vld [vmem:[#allocation5 + $0x120] sm:$0xff]
      %v1336 = vld [vmem:[#allocation5 + $0x128] sm:$0xf]
      %v1338 = vunpack.c.l.b16 %v1286
      %v1339 = vunpack.c.h.b16 %v1286
      %v1340 = vpack.c.b16 %v1338, %v1338
      %v1341 = vpack.c.b16 %v1339, %v1339
      %v1393 = vunpack.c.l.b16 %v1287
      %v1394 = vunpack.c.h.b16 %v1287
      %v1395 = vunpack.c.l.b16 %v1288
      %v1396 = vunpack.c.l.b16 %v1289
      %v1397 = vunpack.c.h.b16 %v1289
      %v1398 = vunpack.c.l.b16 %v1290
      %v1399 = vunpack.c.l.b16 %v1291
      %v1400 = vunpack.c.h.b16 %v1291
      %v1401 = vunpack.c.l.b16 %v1292
      %v1402 = vunpack.c.l.b16 %v1293
      %v1403 = vunpack.c.h.b16 %v1293
      %v1404 = vunpack.c.l.b16 %v1294
      %v1405 = vunpack.c.l.b16 %v1295
      %v1406 = vunpack.c.h.b16 %v1295
      %v1407 = vunpack.c.l.b16 %v1296
      %v1408 = vunpack.c.l.b16 %v1297
      %v1409 = vunpack.c.h.b16 %v1297
      %v1410 = vunpack.c.l.b16 %v1298
      %v1411 = vunpack.c.l.b16 %v1299
      %v1412 = vunpack.c.h.b16 %v1299
      %v1413 = vunpack.c.l.b16 %v1300
      %v1414 = vunpack.c.l.b16 %v1301
      %v1415 = vunpack.c.h.b16 %v1301
      %v1416 = vunpack.c.l.b16 %v1302
      %v1417 = vunpack.c.l.b16 %v1303
      %v1418 = vunpack.c.h.b16 %v1303
      %v1419 = vunpack.c.l.b16 %v1304
      %v1420 = vunpack.c.l.b16 %v1305
      %v1421 = vunpack.c.h.b16 %v1305
      %v1422 = vunpack.c.l.b16 %v1306
      %v1423 = vunpack.c.l.b16 %v1307
      %v1424 = vunpack.c.h.b16 %v1307
      %v1425 = vunpack.c.l.b16 %v1308
      %v1426 = vunpack.c.l.b16 %v1309
      %v1427 = vunpack.c.h.b16 %v1309
      %v1428 = vunpack.c.l.b16 %v1310
      %v1429 = vunpack.c.l.b16 %v1311
      %v1430 = vunpack.c.h.b16 %v1311
      %v1431 = vunpack.c.l.b16 %v1312
      %v1432 = vunpack.c.l.b16 %v1313
      %v1433 = vunpack.c.h.b16 %v1313
      %v1434 = vunpack.c.l.b16 %v1314
      %v1435 = vunpack.c.l.b16 %v1315
      %v1436 = vunpack.c.h.b16 %v1315
      %v1437 = vunpack.c.l.b16 %v1316
      %v1438 = vunpack.c.l.b16 %v1317
      %v1439 = vunpack.c.h.b16 %v1317
      %v1440 = vunpack.c.l.b16 %v1318
      %v1441 = vunpack.c.l.b16 %v1319
      %v1442 = vunpack.c.h.b16 %v1319
      %v1443 = vunpack.c.l.b16 %v1320
      %v1444 = vunpack.c.l.b16 %v1321
      %v1445 = vunpack.c.h.b16 %v1321
      %v1446 = vunpack.c.l.b16 %v1322
      %v1447 = vunpack.c.l.b16 %v1323
      %v1448 = vunpack.c.h.b16 %v1323
      %v1449 = vunpack.c.l.b16 %v1324
      %v1450 = vunpack.c.l.b16 %v1325
      %v1451 = vunpack.c.h.b16 %v1325
      %v1452 = vunpack.c.l.b16 %v1326
      %v1453 = vunpack.c.l.b16 %v1327
      %v1454 = vunpack.c.h.b16 %v1327
      %v1455 = vunpack.c.l.b16 %v1328
      %v1456 = vunpack.c.l.b16 %v1329
      %v1457 = vunpack.c.h.b16 %v1329
      %v1458 = vunpack.c.l.b16 %v1330
      %v1459 = vunpack.c.l.b16 %v1331
      %v1460 = vunpack.c.h.b16 %v1331
      %v1461 = vunpack.c.l.b16 %v1332
      %v1462 = vunpack.c.l.b16 %v1333
      %v1463 = vunpack.c.h.b16 %v1333
      %v1464 = vunpack.c.l.b16 %v1334
      %v1465 = vunpack.c.l.b16 %v1335
      %v1466 = vunpack.c.h.b16 %v1335
      %v1467 = vunpack.c.l.b16 %v1336
      %v1468 = vpack.c.b16 %v1396, %v1393
      %v1469 = vpack.c.b16 %v1397, %v1394
      %v1470 = vpack.c.b16 %v1398, %v1395
      %v1471 = vpack.c.b16 %v1402, %v1399
      %v1472 = vpack.c.b16 %v1403, %v1400
      %v1473 = vpack.c.b16 %v1404, %v1401
      %v1474 = vpack.c.b16 %v1408, %v1405
      %v1475 = vpack.c.b16 %v1409, %v1406
      %v1476 = vpack.c.b16 %v1410, %v1407
      %v1477 = vpack.c.b16 %v1414, %v1411
      %v1478 = vpack.c.b16 %v1415, %v1412
      %v1479 = vpack.c.b16 %v1416, %v1413
      %v1480 = vpack.c.b16 %v1420, %v1417
      %v1481 = vpack.c.b16 %v1421, %v1418
      %v1482 = vpack.c.b16 %v1422, %v1419
      %v1483 = vpack.c.b16 %v1426, %v1423
      %v1484 = vpack.c.b16 %v1427, %v1424
      %v1485 = vpack.c.b16 %v1428, %v1425
      %v1486 = vpack.c.b16 %v1432, %v1429
      %v1487 = vpack.c.b16 %v1433, %v1430
      %v1488 = vpack.c.b16 %v1434, %v1431
      %v1489 = vpack.c.b16 %v1438, %v1435
      %v1490 = vpack.c.b16 %v1439, %v1436
      %v1491 = vpack.c.b16 %v1440, %v1437
      %v1492 = vpack.c.b16 %v1444, %v1441
      %v1493 = vpack.c.b16 %v1445, %v1442
      %v1494 = vpack.c.b16 %v1446, %v1443
      %v1495 = vpack.c.b16 %v1450, %v1447
      %v1496 = vpack.c.b16 %v1451, %v1448
      %v1497 = vpack.c.b16 %v1452, %v1449
      %v1498 = vpack.c.b16 %v1456, %v1453
      %v1499 = vpack.c.b16 %v1457, %v1454
      %v1500 = vpack.c.b16 %v1458, %v1455
      %v1501 = vpack.c.b16 %v1462, %v1459
      %v1502 = vpack.c.b16 %v1463, %v1460
      %v1503 = vpack.c.b16 %v1464, %v1461
      %v1504 = vpack.c.b16 %v1465, %v1465
      %v1505 = vpack.c.b16 %v1466, %v1466
      %v1506 = vpack.c.b16 %v1467, %v1467
      %v1544 = vsel %vm604, %v1341, 0
      %v1547 = vsel %vm608, %v1504, 0
      %v1550 = vsel %vm608, %v1505, 0
      %v1553 = vsel %vm608, %v1506, 0
      %1555 = vmatprep.subr.bf16.mxu0 %v1469
      %1556 = vmatpush1.bf16.msra.mxu0 %v1468
      %1557 = vmatprep.subr.bf16.mxu0 %v1472
      %1558 = vmatpush1.bf16.msra.mxu0 %v1471
      %1559 = vmatprep.subr.bf16.mxu0 %v1475
      %1560 = vmatpush1.bf16.msra.mxu0 %v1474
      %1561 = vmatprep.subr.bf16.mxu0 %v1478
      %1562 = vmatpush1.bf16.msra.mxu0 %v1477
      %1563 = vmatprep.subr.bf16.mxu0 %v1481
      %1564 = vmatpush1.bf16.msra.mxu0 %v1480
      %1565 = vmatprep.subr.bf16.mxu0 %v1484
      %1566 = vmatpush1.bf16.msra.mxu0 %v1483
      %1567 = vmatprep.subr.bf16.mxu0 %v1487
      %1568 = vmatpush1.bf16.msra.mxu0 %v1486
      %1569 = vmatprep.subr.bf16.mxu0 %v1490
      %1570 = vmatpush1.bf16.msra.mxu0 %v1489
      %1571 = vmatprep.subr.bf16.mxu0 %v1493
      %1572 = vmatpush1.bf16.msra.mxu0 %v1492
      %1573 = vmatprep.subr.bf16.mxu0 %v1496
      %1574 = vmatpush1.bf16.msra.mxu0 %v1495
      %1575 = vmatprep.subr.bf16.mxu0 %v1499
      %1576 = vmatpush1.bf16.msra.mxu0 %v1498
      %1577 = vmatprep.subr.bf16.mxu0 %v1502
      %1578 = vmatpush1.bf16.msra.mxu0 %v1501
      %1579 = vmatprep.subr.bf16.mxu0 %v1550
      %1580 = vmatpush1.bf16.msra.mxu0 %v1547
      %1581 = vmatprep.subr.bf16.mxu0 0
      %1582 = vmatpush1.bf16.msra.mxu0 0
      %1583 = vmatprep.subr.bf16.mxu0 0
      %1584 = vmatpush1.bf16.msra.mxu0 0
      %1585 = vmatprep.subr.bf16.mxu0 0
      %1586 = vmatpush1.bf16.msra.mxu0 0
      %1587 = vmatprep.mubr.bf16.mxu0 %v1544
      %1588 = vmatmul.mubr.bf16.gmra.mrb[0].mxu0 %v1340
      %v1589 = vpop.f32.mrb[0].mxu0
      %v1590 = vadd.f32 0.0, %v1589
      %v1591 = vpop.f32.mrb[0].mxu0
      %v1592 = vadd.f32 0.0, %v1591
      %v1593 = vpop.f32.mrb[0].mxu0
      %v1594 = vpop.f32.mrb[0].mxu0
      %1595 = vdwg.mxu0
      %1596 = vmatprep.subr.bf16.mxu0 0
      %1597 = vmatpush1.bf16.msra.mxu0 %v1470
      %1598 = vmatprep.subr.bf16.mxu0 0
      %1599 = vmatpush1.bf16.msra.mxu0 %v1473
      %1600 = vmatprep.subr.bf16.mxu0 0
      %1601 = vmatpush1.bf16.msra.mxu0 %v1476
      %1602 = vmatprep.subr.bf16.mxu0 0
      %1603 = vmatpush1.bf16.msra.mxu0 %v1479
      %1604 = vmatprep.subr.bf16.mxu0 0
      %1605 = vmatpush1.bf16.msra.mxu0 %v1482
      %1606 = vmatprep.subr.bf16.mxu0 0
      %1607 = vmatpush1.bf16.msra.mxu0 %v1485
      %1608 = vmatprep.subr.bf16.mxu0 0
      %1609 = vmatpush1.bf16.msra.mxu0 %v1488
      %1610 = vmatprep.subr.bf16.mxu0 0
      %1611 = vmatpush1.bf16.msra.mxu0 %v1491
      %1612 = vmatprep.subr.bf16.mxu0 0
      %1613 = vmatpush1.bf16.msra.mxu0 %v1494
      %1614 = vmatprep.subr.bf16.mxu0 0
      %1615 = vmatpush1.bf16.msra.mxu0 %v1497
      %1616 = vmatprep.subr.bf16.mxu0 0
      %1617 = vmatpush1.bf16.msra.mxu0 %v1500
      %1618 = vmatprep.subr.bf16.mxu0 0
      %1619 = vmatpush1.bf16.msra.mxu0 %v1503
      %1620 = vmatprep.subr.bf16.mxu0 0
      %1621 = vmatpush1.bf16.msra.mxu0 %v1553
      %1622 = vmatprep.subr.bf16.mxu0 0
      %1623 = vmatpush1.bf16.msra.mxu0 0
      %1624 = vmatprep.subr.bf16.mxu0 0
      %1625 = vmatpush1.bf16.msra.mxu0 0
      %1626 = vmatprep.subr.bf16.mxu0 0
      %1627 = vmatpush1.bf16.msra.mxu0 0
      %1628 = vmatprep.mubr.bf16.mxu0 %v1544
      %1629 = vmatmul.mubr.bf16.gmra.mrb[0].mxu0 %v1340
      %v1630 = vpop.f32.mrb[0].mxu0
      %v1631 = vadd.f32 0.0, %v1630
      %v1632 = vpop.f32.mrb[0].mxu0
      %v1633 = vpop.f32.mrb[0].mxu0
      %v1634 = vpop.f32.mrb[0].mxu0
      %1635 = vdwg.mxu0
      %v1636 = vmax.f32 %v1590, 0.0
      %v1637 = vmax.f32 %v1592, 0.0
      %v1638 = vmax.f32 %v1631, 0.0
      %1639 = vst.msk [vmem:[%s197 + $0x30] sm:$0xff] %vm708, %v1636
      %1641 = vrot.lane.b32.xlu0 %v1636, 124
      %v1642 = vpop.permute.xlu0 %1641
      %1644 = vst.msk [vmem:[%s197 + $0x30] sm:$0xff] %vm719, %v1642
      %1645 = vrot.lane.b32.xlu0 %v1636, 120
      %v1646 = vpop.permute.xlu0 %1645
      %1648 = vst.msk [vmem:[%s197 + $0x30] sm:$0xff] %vm728, %v1646
      %1649 = vrot.lane.b32.xlu0 %v1636, 116
      %v1650 = vpop.permute.xlu0 %1649
      %1652 = vst.msk [vmem:[%s197 + $0x30] sm:$0xff] %vm737, %v1650
      %1653 = vrot.lane.b32.xlu0 %v1636, 112
      %v1654 = vpop.permute.xlu0 %1653
      %1656 = vst.msk [vmem:[%s197 + $0x30] sm:$0xff] %vm746, %v1654
      %1657 = vrot.lane.b32.xlu0 %v1636, 108
      %v1658 = vpop.permute.xlu0 %1657
      %1660 = vst.msk [vmem:[%s197 + $0x30] sm:$0xff] %vm755, %v1658
      %1662 = vrot.lane.b32.xlu0 %v1636, 104
      %v1663 = vpop.permute.xlu0 %1662
      %1664 = vrot.lane.b32.xlu0 %v1637, 104
      %v1665 = vpop.permute.xlu0 %1664
      %vm1666 = vcmask 850944
      %v1667 = vsel %vm1666, %v1663, %v1665
      %1669 = vst.msk [vmem:[%s197 + $0x30] sm:$0xff] %vm764, %v1667
      %1670 = vrot.lane.b32.xlu0 %v1637, 100
      %v1671 = vpop.permute.xlu0 %1670
      %1673 = vst.msk [vmem:[%s197 + $0x30] sm:$0xff] %vm782, %v1671
      %1674 = vrot.lane.b32.xlu0 %v1637, 96
      %v1675 = vpop.permute.xlu0 %1674
      %1677 = vst.msk [vmem:[%s197 + $0x38] sm:$0xff] %vm708, %v1675
      %1678 = vrot.lane.b32.xlu0 %v1637, 92
      %v1679 = vpop.permute.xlu0 %1678
      %1681 = vst.msk [vmem:[%s197 + $0x38] sm:$0xff] %vm719, %v1679
      %1682 = vrot.lane.b32.xlu0 %v1637, 88
      %v1683 = vpop.permute.xlu0 %1682
      %1685 = vst.msk [vmem:[%s197 + $0x38] sm:$0xff] %vm728, %v1683
      %1686 = vrot.lane.b32.xlu0 %v1637, 84
      %v1687 = vpop.permute.xlu0 %1686
      %1689 = vst.msk [vmem:[%s197 + $0x38] sm:$0xff] %vm737, %v1687
      %1690 = vrot.lane.b32.xlu0 %v1637, 80
      %v1691 = vpop.permute.xlu0 %1690
      %1693 = vst.msk [vmem:[%s197 + $0x38] sm:$0xff] %vm746, %v1691
      %1695 = vrot.lane.b32.xlu0 %v1638, 76
      %v1696 = vpop.permute.xlu0 %1695
      %1698 = vst.msk [vmem:[%s197 + $0x38] sm:$0xff] %vm755, %v1696
      %1699 = vrot.lane.b32.xlu0 %v1638, 72
      %v1700 = vpop.permute.xlu0 %1699
      %1702 = vst.msk [vmem:[%s197 + $0x38] sm:$0xff] %vm764, %v1700
      %1703 = vrot.lane.b32.xlu0 %v1638, 68
      %v1704 = vpop.permute.xlu0 %1703
      %1706 = vst.msk [vmem:[%s197 + $0x38] sm:$0xff] %vm782, %v1704
      %p1707 = scmp.lt.s32.totalorder %s15, 1
      %s1708 = scalar_select %p1707, %s15, 1
      %s1709 = smul.addr %s1708, 8
      %s1710 = smul.addr %s1709, 8
      %s1711 = scalar_lea.vmem %s4, %s1710
      // Predicated region
      $region37: #{inception_block_light.1} parent=35 // pred_check
        %p1712 = pneg %p122
      $region38: #{inception_block_light.1} parent=35 // pred_check_branch
        %1714 = sbr.rel (%p1712) target = $region40
      $region39: #{inception_block_light.1} parent=35 // pred_region
        _
      $region40: #{inception_block_light.1} parent=35 // pred_fallthru
        _
    $region36: #{inception_block_light.1} parent=5 // pred_fallthru
      _
    %p1715 = scmp.le.s32.totalorder 2, %s10
    // Predicated region
    $region41: #{inception_block_light.1} parent=5 // pred_check
      %p1716 = pneg %p1715
    $region42: #{inception_block_light.1} parent=5 // pred_check_branch
      %1718 = sbr.rel (%p1716) target = $region44
    $region43: #{inception_block_light.1} parent=5 // pred_region
      %s1719 = ssub.s32 %s10, 2
      // Predicated region
      $region45: #{inception_block_light.1} parent=43 // pred_check
        %p1720 = pneg %p128
      $region46: #{inception_block_light.1} parent=43 // pred_check_branch
        %1722 = sbr.rel (%p1720) target = $region48
      $region47: #{inception_block_light.1} parent=43 // pred_region
        %p1723 = scmp.lt.s32.totalorder %s16, 1
        %s1724 = scalar_select %p1723, %s16, 1
        %s1725 = smul.addr %s1724, 8
        %s1726 = smul.addr %s1725, 8
        %s1727 = scalar_lea.vmem %s4, %s1726
      $region48: #{inception_block_light.1} parent=43 // pred_fallthru
        _
    $region44: #{inception_block_light.1} parent=5 // pred_fallthru
      _
  $region6: #{inception_block_light.1} parent=0 // loop_footer
    %s14 = sadd.s32 1, %s10
  $region7: #{inception_block_light.1} parent=0 // loop_footer_branch
    %9 = sbr.rel target = $region3
  $region8: #{inception_block_light.1} parent=0 // loop_exit
    _

</llo_original>
